<compile_context>
chip_gen: v5e
topology: v5e:2x2
jax: 0.10.0
libtpu: 0.0.40
codegen_flags: <defaults>
</compile_context>

<pallas_src>
import numpy as np
import jax
import jax.numpy as jnp
from jax import lax
from jax.experimental import pallas as pl
from jax.experimental.pallas import tpu as pltpu

VMEM_LIMIT = 64 * 1024 * 1024  # explicit cap: safe on v5e/v6e (128 MiB) and v7x (64 MiB)


def _lane_tile(dim, target):
    """Tile size for a lane (last) dim: full dim if small, else a multiple of 128."""
    if dim <= target:
        return dim
    return max(128, (target // 128) * 128)


# ----------------------------- Pallas kernels ------------------------------

def _pw_conv_kernel(x_ref, w_ref, b_ref, o_ref):
    # x: (1, Cin, tS), w: (Cout, Cin), b: (Cout, 1) -> o: (1, Cout, tS)  (lane-dense store)
    acc = jnp.dot(w_ref[...], x_ref[0], preferred_element_type=jnp.float32)
    o_ref[0] = (acc + b_ref[...]).astype(o_ref.dtype)


def pointwise_conv(x_ncs, w, b, out_dtype=jnp.float32, *, s_tile=2048):
    """1x1 Conv2d with bias, channel-major: (n, Cin, S) -> (n, Cout, S)."""
    n, cin, s = x_ncs.shape
    cout = w.shape[0]
    ts = _lane_tile(s, s_tile)
    return pl.pallas_call(
        _pw_conv_kernel,
        out_shape=jax.ShapeDtypeStruct((n, cout, s), out_dtype),
        grid=(n, pl.cdiv(s, ts)),
        in_specs=[
            pl.BlockSpec((1, cin, ts), lambda bi, si: (bi, 0, si)),
            pl.BlockSpec((cout, cin), lambda bi, si: (0, 0)),
            pl.BlockSpec((cout, 1), lambda bi, si: (0, 0)),
        ],
        out_specs=pl.BlockSpec((1, cout, ts), lambda bi, si: (bi, 0, si)),
        compiler_params=pltpu.CompilerParams(
            dimension_semantics=("parallel", "parallel"),
            vmem_limit_bytes=VMEM_LIMIT),
    )(x_ncs, w, b.reshape(cout, 1))


def _attn_z_kernel(theta_ref, phi_ref, g_ref, zw_ref, zb_ref, o_ref):
    # theta: (1, tS1, C2) row-major; phi/g: (1, C2, S2) channel-major
    # zw: (C, C2), zb: (C, 1) -> o: (1, C, tS1)  (lane-dense store)
    th = theta_ref[0]                           # (tS1, C2) bf16
    ph = phi_ref[0]                             # (C2, S2)  bf16
    gg = g_ref[0]                               # (C2, S2)  bf16
    s = jnp.dot(th, ph, preferred_element_type=jnp.float32)          # (tS1, S2) f32
    s = s - jnp.max(s, axis=-1, keepdims=True)                       # stable softmax(dim=-1)
    p = jnp.exp(s)
    p = p * pl.reciprocal(jnp.sum(p, axis=-1, keepdims=True), approx=True)
    # y (channel-major) = g_cm @ p^T  -> (C2, tS1)
    y = lax.dot_general(gg, p.astype(gg.dtype), (((1,), (1,)), ((), ())),
                        preferred_element_type=jnp.float32)
    # fused z 1x1 conv: zy = Wz @ y + bz  -> (C, tS1), lane-dense store.
    zy = jnp.dot(zw_ref[...], y.astype(zw_ref.dtype),
                 preferred_element_type=jnp.float32) + zb_ref[...]
    o_ref[0] = zy.astype(o_ref.dtype)


def attention_z(theta_rows, phi_cm, g_cm, z_w, z_b, *, s1_tile=512):
    """z(softmax(theta @ phi, -1) @ g) fused, batched & tiled over S1; channel-major out."""
    # TODO(synk): for very large S2, switch to a flash-style online-softmax over S2 tiles.
    n, s1, c2 = theta_rows.shape
    s2 = phi_cm.shape[2]
    c = z_w.shape[0]
    ts1 = _lane_tile(s1, s1_tile)
    return pl.pallas_call(
        _attn_z_kernel,
        out_shape=jax.ShapeDtypeStruct((n, c, s1), jnp.bfloat16),
        grid=(n, pl.cdiv(s1, ts1)),
        in_specs=[
            pl.BlockSpec((1, ts1, c2), lambda bi, qi: (bi, qi, 0)),
            pl.BlockSpec((1, c2, s2), lambda bi, qi: (bi, 0, 0)),
            pl.BlockSpec((1, c2, s2), lambda bi, qi: (bi, 0, 0)),
            pl.BlockSpec((c, c2), lambda bi, qi: (0, 0)),
            pl.BlockSpec((c, 1), lambda bi, qi: (0, 0)),
        ],
        out_specs=pl.BlockSpec((1, c, ts1), lambda bi, qi: (bi, 0, qi)),
        compiler_params=pltpu.CompilerParams(
            dimension_semantics=("parallel", "parallel"),
            vmem_limit_bytes=VMEM_LIMIT),
    )(theta_rows, phi_cm, g_cm, z_w, z_b)


def _upsample_add_kernel(zy_ref, awT_ref, ah_ref, x_ref, o_ref):
    # zy: (1, h4, w4) bf16; awT: (w4, w) bf16; ah: (h, h4) bf16; x: (1, h, w) f32
    t = jnp.dot(zy_ref[0], awT_ref[...], preferred_element_type=jnp.float32)      # (h4, w)
    up = jnp.dot(ah_ref[...], t.astype(ah_ref.dtype),
                 preferred_element_type=jnp.float32)                              # (h, w)
    o_ref[0] = up + x_ref[0]


def upsample_add(zy, awT, ah, x_res):
    """out[i] = Ah @ zy[i] @ Aw^T + x_res[i]  (separable bilinear, align_corners=True)."""
    # TODO(synk): tile over h/w for very large spatial sizes (full (h, w) slice per step here).
    nc, h4, w4 = zy.shape
    h, w = x_res.shape[1], x_res.shape[2]
    return pl.pallas_call(
        _upsample_add_kernel,
        out_shape=jax.ShapeDtypeStruct((nc, h, w), jnp.float32),
        grid=(nc,),
        in_specs=[
            pl.BlockSpec((1, h4, w4), lambda i: (i, 0, 0)),
            pl.BlockSpec((w4, w), lambda i: (0, 0)),
            pl.BlockSpec((h, h4), lambda i: (0, 0)),
            pl.BlockSpec((1, h, w), lambda i: (i, 0, 0)),
        ],
        out_specs=pl.BlockSpec((1, h, w), lambda i: (i, 0, 0)),
        compiler_params=pltpu.CompilerParams(
            dimension_semantics=("parallel",),
            vmem_limit_bytes=VMEM_LIMIT),
    )(zy, awT, ah, x_res)


# ------------------------------- JAX glue -----------------------------------

def down4(x_nchw):
    # self.down: depthwise 4x4 stride-4 conv, all weights = 1/16, no bias == 4x4 avg pool.
    n, c, h, w = x_nchw.shape
    return x_nchw.reshape(n, c, h // 4, 4, w // 4, 4).mean(axis=(3, 5))


def maxpool2_cm(x_ncs, h, w):
    # F.max_pool2d(kernel_size=2, stride=2) on a channel-major (n, c, h*w) tensor.
    n, c, _ = x_ncs.shape
    p = x_ncs.reshape(n, c, h // 2, 2, w // 2, 2).max(axis=(3, 5))
    return p.reshape(n, c, (h // 2) * (w // 2))


def bilinear_matrix(out_size, in_size):
    """1-D interpolation matrix matching F.interpolate(bilinear, align_corners=True)."""
    A = np.zeros((out_size, in_size), dtype=np.float64)
    if in_size == 1 or out_size == 1:
        A[:, 0] = 1.0
        return A.astype(np.float32)
    coords = np.arange(out_size) * (in_size - 1) / (out_size - 1)
    i0 = np.clip(np.floor(coords).astype(np.int64), 0, in_size - 2)
    frac = coords - i0
    for o in range(out_size):
        A[o, i0[o]] += 1.0 - frac[o]
        A[o, i0[o] + 1] += frac[o]
    return A.astype(np.float32)


def make_interp_mats(h, w):
    """Precomputed (hoisted) separable bilinear matrices, bf16 MXU operands."""
    ah = jnp.asarray(bilinear_matrix(h, h // 4), dtype=jnp.bfloat16)        # (h, h/4)
    awT = jnp.asarray(bilinear_matrix(w, w // 4).T, dtype=jnp.bfloat16)     # (w/4, w)
    return ah, awT


def init_params(key, c):
    """Deterministic init mimicking nn.Conv2d default (uniform +/- 1/sqrt(fan_in))."""
    c2 = c // 2
    ks = jax.random.split(key, 8)

    def conv_init(kw, kb, cout, cin):
        bound = 1.0 / np.sqrt(cin)
        wt = jax.random.uniform(kw, (cout, cin), jnp.float32, -bound, bound)
        bs = jax.random.uniform(kb, (cout,), jnp.float32, -bound, bound)
        return wt, bs

    theta_w, theta_b = conv_init(ks[0], ks[1], c2, c)
    phi_w, phi_b = conv_init(ks[2], ks[3], c2, c)
    g_w, g_b = conv_init(ks[4], ks[5], c2, c)
    z_w, z_b = conv_init(ks[6], ks[7], c, c2)
    return dict(
        # theta & phi fused along Cout (they consume the same x_down)
        tp_w=jnp.concatenate([theta_w, phi_w], axis=0),
        tp_b=jnp.concatenate([theta_b, phi_b], axis=0),
        g_w=g_w, g_b=g_b, z_w=z_w, z_b=z_b)


def adf_forward(params, x, depth_map, ah, awT):
    n, c, h, w = x.shape
    c2 = c // 2
    h4, w4 = h // 4, w // 4
    s1 = h4 * w4

    x_down = down4(x).reshape(n, c, s1)                    # (n, c, s1) channel-major
    g_down = down4(depth_map).reshape(n, c, s1)

    # Fused theta+phi 1x1 conv (single pass over x_down), bf16 outputs for the MXU.
    tp = pointwise_conv(x_down, params["tp_w"], params["tp_b"], jnp.bfloat16)   # (n, 2*c2, s1)
    theta = jnp.transpose(tp[:, :c2, :], (0, 2, 1))                             # (n, s1, c2)
    phi = maxpool2_cm(tp[:, c2:, :], h4, w4)                                    # (n, c2, s2)

    g_feat = pointwise_conv(g_down, params["g_w"], params["g_b"], jnp.bfloat16) # (n, c2, s1)
    g_feat = maxpool2_cm(g_feat, h4, w4)                                        # (n, c2, s2)

    # attention + z projection fused: (n, c, s1) bf16, channel-major.
    zy = attention_z(theta, phi, g_feat,
                     params["z_w"].astype(jnp.bfloat16),
                     params["z_b"].reshape(c, 1))

    out = upsample_add(zy.reshape(n * c, h4, w4), awT, ah, x.reshape(n * c, h, w))
    return out.reshape(n, c, h, w)


if __name__ == "__main__":
    N, C, H, W = 2, 4, 16, 16   # in_channels=4; H, W divisible by 8
    key = jax.random.PRNGKey(0)
    k_params, k_x, k_d = jax.random.split(key, 3)

    params = init_params(k_params, C)
    x = jax.random.normal(k_x, (N, C, H, W), jnp.float32)
    depth_map = jax.random.normal(k_d, (N, C, H, W), jnp.float32)
    ah, awT = make_interp_mats(H, W)   # hoisted out of the forward pass

    fwd = jax.jit(adf_forward)
    out = jax.block_until_ready(fwd(params, x, depth_map, ah, awT))
    assert out.shape == (N, C, H, W) and out.dtype == jnp.float32
    assert bool(jnp.all(jnp.isfinite(out)))
    print("KERNEL_OK")
</pallas_src>

<mosaic_0001>
module attributes {stable_mosaic.version = 11 : i64} {
  func.func @_pw_conv_kernel(%arg0: i32, %arg1: i32, %arg2: memref<1x4x16xf32, #tpu.memory_space<vmem>>, %arg3: memref<4x4xf32, #tpu.memory_space<vmem>>, %arg4: memref<4x1xf32, #tpu.memory_space<vmem>>, %arg5: memref<1x4x16xbf16, #tpu.memory_space<vmem>>) attributes {dimension_semantics = [#tpu.dimension_semantics<parallel>, #tpu.dimension_semantics<parallel>], iteration_bounds = array<i64: 2, 1>, scalar_prefetch = 0 : i64, scratch_operands = 0 : i64, tpu.core_type = #tpu.core_type<tc>, window_params = [{transform_indices = @transform_0, window_bounds = array<i64: 1, 4, 16>}, {pipeline_mode = #tpu.pipeline_mode<synchronous>, transform_indices = @transform_1, window_bounds = array<i64: 4, 4>}, {pipeline_mode = #tpu.pipeline_mode<synchronous>, transform_indices = @transform_2, window_bounds = array<i64: 4, 1>}, {transform_indices = @transform_3, window_bounds = array<i64: 1, 4, 16>}]} {
    %c0 = arith.constant 0 : index
    %c0_0 = arith.constant 0 : index
    %0 = vector.load %arg3[%c0, %c0_0] : memref<4x4xf32, #tpu.memory_space<vmem>>, vector<4x4xf32>
    %c0_1 = arith.constant 0 : index
    %c0_2 = arith.constant 0 : index
    %c0_3 = arith.constant 0 : index
    %1 = vector.load %arg2[%c0_1, %c0_2, %c0_3] : memref<1x4x16xf32, #tpu.memory_space<vmem>>, vector<1x4x16xf32>
    %2 = vector.shape_cast %1 : vector<1x4x16xf32> to vector<4x16xf32>
    %cst = arith.constant dense<0.000000e+00> : vector<4x16xf32>
    %3 = tpu.matmul %0, %2, %cst {dimension_numbers = #tpu.dot_dimension_numbers<[1], [0], [0], [1], [0, 0, 1, 1], [], []>} : vector<4x4xf32>, vector<4x16xf32>, vector<4x16xf32> -> vector<4x16xf32>
    %c0_4 = arith.constant 0 : index
    %c0_5 = arith.constant 0 : index
    %4 = vector.load %arg4[%c0_4, %c0_5] : memref<4x1xf32, #tpu.memory_space<vmem>>, vector<4x1xf32>
    %5 = vector.broadcast %4 : vector<4x1xf32> to vector<4x16xf32>
    %6 = arith.addf %3, %5 : vector<4x16xf32>
    %7 = arith.truncf %6 : vector<4x16xf32> to vector<4x16xbf16>
    %c0_6 = arith.constant 0 : index
    %c0_7 = arith.constant 0 : index
    %c0_8 = arith.constant 0 : index
    %8 = vector.load %arg5[%c0_6, %c0_7, %c0_8] : memref<1x4x16xbf16, #tpu.memory_space<vmem>>, vector<1x4x16xbf16>
    %9 = vector.shape_cast %8 : vector<1x4x16xbf16> to vector<4x16xbf16>
    %10 = vector.shape_cast %7 : vector<4x16xbf16> to vector<1x4x16xbf16>
    tpu.vector_store %arg5[%c0_6, %c0_7, %c0_8], %10 {strides = array<i32>} : memref<1x4x16xbf16, #tpu.memory_space<vmem>>, vector<1x4x16xbf16>,
    return
  }
  func.func @transform_0(%arg0: i32, %arg1: i32) -> (i32, i32, i32) {
    %c0_i32 = arith.constant 0 : i32
    %c0_i32_0 = arith.constant 0 : i32
    return %arg0, %c0_i32, %arg1 : i32, i32, i32
  }
  func.func @transform_1(%arg0: i32, %arg1: i32) -> (i32, i32) {
    %c0_i32 = arith.constant 0 : i32
    %c0_i32_0 = arith.constant 0 : i32
    %c0_i32_1 = arith.constant 0 : i32
    return %c0_i32, %c0_i32_0 : i32, i32
  }
  func.func @transform_2(%arg0: i32, %arg1: i32) -> (i32, i32) {
    %c0_i32 = arith.constant 0 : i32
    %c0_i32_0 = arith.constant 0 : i32
    %c0_i32_1 = arith.constant 0 : i32
    return %c0_i32, %c0_i32_0 : i32, i32
  }
  func.func @transform_3(%arg0: i32, %arg1: i32) -> (i32, i32, i32) {
    %c0_i32 = arith.constant 0 : i32
    %c0_i32_0 = arith.constant 0 : i32
    return %arg0, %c0_i32, %arg1 : i32, i32, i32
  }
}

module attributes {stable_mosaic.version = 11 : i64} {
  func.func @_pw_conv_kernel(%arg0: i32, %arg1: i32, %arg2: memref<1x4x16xf32, #tpu.memory_space<vmem>>, %arg3: memref<2x4xf32, #tpu.memory_space<vmem>>, %arg4: memref<2x1xf32, #tpu.memory_space<vmem>>, %arg5: memref<1x2x16xbf16, #tpu.memory_space<vmem>>) attributes {dimension_semantics = [#tpu.dimension_semantics<parallel>, #tpu.dimension_semantics<parallel>], iteration_bounds = array<i64: 2, 1>, scalar_prefetch = 0 : i64, scratch_operands = 0 : i64, tpu.core_type = #tpu.core_type<tc>, window_params = [{transform_indices = @transform_0, window_bounds = array<i64: 1, 4, 16>}, {pipeline_mode = #tpu.pipeline_mode<synchronous>, transform_indices = @transform_1, window_bounds = array<i64: 2, 4>}, {pipeline_mode = #tpu.pipeline_mode<synchronous>, transform_indices = @transform_2, window_bounds = array<i64: 2, 1>}, {transform_indices = @transform_3, window_bounds = array<i64: 1, 2, 16>}]} {
    %c0 = arith.constant 0 : index
    %c0_0 = arith.constant 0 : index
    %0 = vector.load %arg3[%c0, %c0_0] : memref<2x4xf32, #tpu.memory_space<vmem>>, vector<2x4xf32>
    %c0_1 = arith.constant 0 : index
    %c0_2 = arith.constant 0 : index
    %c0_3 = arith.constant 0 : index
    %1 = vector.load %arg2[%c0_1, %c0_2, %c0_3] : memref<1x4x16xf32, #tpu.memory_space<vmem>>, vector<1x4x16xf32>
    %2 = vector.shape_cast %1 : vector<1x4x16xf32> to vector<4x16xf32>
    %cst = arith.constant dense<0.000000e+00> : vector<2x16xf32>
    %3 = tpu.matmul %0, %2, %cst {dimension_numbers = #tpu.dot_dimension_numbers<[1], [0], [0], [1], [0, 0, 1, 1], [], []>} : vector<2x4xf32>, vector<4x16xf32>, vector<2x16xf32> -> vector<2x16xf32>
    %c0_4 = arith.constant 0 : index
    %c0_5 = arith.constant 0 : index
    %4 = vector.load %arg4[%c0_4, %c0_5] : memref<2x1xf32, #tpu.memory_space<vmem>>, vector<2x1xf32>
    %5 = vector.broadcast %4 : vector<2x1xf32> to vector<2x16xf32>
    %6 = arith.addf %3, %5 : vector<2x16xf32>
    %7 = arith.truncf %6 : vector<2x16xf32> to vector<2x16xbf16>
    %c0_6 = arith.constant 0 : index
    %c0_7 = arith.constant 0 : index
    %c0_8 = arith.constant 0 : index
    %8 = vector.load %arg5[%c0_6, %c0_7, %c0_8] : memref<1x2x16xbf16, #tpu.memory_space<vmem>>, vector<1x2x16xbf16>
    %9 = vector.shape_cast %8 : vector<1x2x16xbf16> to vector<2x16xbf16>
    %10 = vector.shape_cast %7 : vector<2x16xbf16> to vector<1x2x16xbf16>
    tpu.vector_store %arg5[%c0_6, %c0_7, %c0_8], %10 {strides = array<i32>} : memref<1x2x16xbf16, #tpu.memory_space<vmem>>, vector<1x2x16xbf16>,
    return
  }
  func.func @transform_0(%arg0: i32, %arg1: i32) -> (i32, i32, i32) {
    %c0_i32 = arith.constant 0 : i32
    %c0_i32_0 = arith.constant 0 : i32
    return %arg0, %c0_i32, %arg1 : i32, i32, i32
  }
  func.func @transform_1(%arg0: i32, %arg1: i32) -> (i32, i32) {
    %c0_i32 = arith.constant 0 : i32
    %c0_i32_0 = arith.constant 0 : i32
    %c0_i32_1 = arith.constant 0 : i32
    return %c0_i32, %c0_i32_0 : i32, i32
  }
  func.func @transform_2(%arg0: i32, %arg1: i32) -> (i32, i32) {
    %c0_i32 = arith.constant 0 : i32
    %c0_i32_0 = arith.constant 0 : i32
    %c0_i32_1 = arith.constant 0 : i32
    return %c0_i32, %c0_i32_0 : i32, i32
  }
  func.func @transform_3(%arg0: i32, %arg1: i32) -> (i32, i32, i32) {
    %c0_i32 = arith.constant 0 : i32
    %c0_i32_0 = arith.constant 0 : i32
    return %arg0, %c0_i32, %arg1 : i32, i32, i32
  }
}

module attributes {stable_mosaic.version = 11 : i64} {
  func.func @_attn_z_kernel(%arg0: i32, %arg1: i32, %arg2: memref<1x16x2xbf16, #tpu.memory_space<vmem>>, %arg3: memref<1x2x4xbf16, #tpu.memory_space<vmem>>, %arg4: memref<1x2x4xbf16, #tpu.memory_space<vmem>>, %arg5: memref<4x2xbf16, #tpu.memory_space<vmem>>, %arg6: memref<4x1xf32, #tpu.memory_space<vmem>>, %arg7: memref<1x4x16xbf16, #tpu.memory_space<vmem>>) attributes {dimension_semantics = [#tpu.dimension_semantics<parallel>, #tpu.dimension_semantics<parallel>], iteration_bounds = array<i64: 2, 1>, scalar_prefetch = 0 : i64, scratch_operands = 0 : i64, tpu.core_type = #tpu.core_type<tc>, window_params = [{transform_indices = @transform_0, window_bounds = array<i64: 1, 16, 2>}, {transform_indices = @transform_1, window_bounds = array<i64: 1, 2, 4>}, {transform_indices = @transform_2, window_bounds = array<i64: 1, 2, 4>}, {pipeline_mode = #tpu.pipeline_mode<synchronous>, transform_indices = @transform_3, window_bounds = array<i64: 4, 2>}, {pipeline_mode = #tpu.pipeline_mode<synchronous>, transform_indices = @transform_4, window_bounds = array<i64: 4, 1>}, {transform_indices = @transform_5, window_bounds = array<i64: 1, 4, 16>}]} {
    %c0 = arith.constant 0 : index
    %c0_0 = arith.constant 0 : index
    %c0_1 = arith.constant 0 : index
    %0 = vector.load %arg2[%c0, %c0_0, %c0_1] : memref<1x16x2xbf16, #tpu.memory_space<vmem>>, vector<1x16x2xbf16>
    %1 = vector.shape_cast %0 : vector<1x16x2xbf16> to vector<16x2xbf16>
    %c0_2 = arith.constant 0 : index
    %c0_3 = arith.constant 0 : index
    %c0_4 = arith.constant 0 : index
    %2 = vector.load %arg3[%c0_2, %c0_3, %c0_4] : memref<1x2x4xbf16, #tpu.memory_space<vmem>>, vector<1x2x4xbf16>
    %3 = vector.shape_cast %2 : vector<1x2x4xbf16> to vector<2x4xbf16>
    %c0_5 = arith.constant 0 : index
    %c0_6 = arith.constant 0 : index
    %c0_7 = arith.constant 0 : index
    %4 = vector.load %arg4[%c0_5, %c0_6, %c0_7] : memref<1x2x4xbf16, #tpu.memory_space<vmem>>, vector<1x2x4xbf16>
    %5 = vector.shape_cast %4 : vector<1x2x4xbf16> to vector<2x4xbf16>
    %cst = arith.constant dense<0.000000e+00> : vector<16x4xf32>
    %6 = tpu.matmul %1, %3, %cst {dimension_numbers = #tpu.dot_dimension_numbers<[1], [0], [0], [1], [0, 0, 1, 1], [], []>} : vector<16x2xbf16>, vector<2x4xbf16>, vector<16x4xf32> -> vector<16x4xf32>
    %cst_8 = arith.constant dense<0xFF800000> : vector<16xf32>
    %7 = vector.multi_reduction <maximumf>, %6, %cst_8 [1] : vector<16x4xf32> to vector<16xf32>
    %8 = vector.shape_cast %7 : vector<16xf32> to vector<16x1xf32>
    %9 = vector.broadcast %8 : vector<16x1xf32> to vector<16x4xf32>
    %10 = arith.subf %6, %9 : vector<16x4xf32>
    %11 = math.exp %10 : vector<16x4xf32>
    %cst_9 = arith.constant dense<0.000000e+00> : vector<16xf32>
    %12 = vector.multi_reduction <add>, %11, %cst_9 [1] : vector<16x4xf32> to vector<16xf32>
    %13 = vector.shape_cast %12 : vector<16xf32> to vector<16x1xf32>
    %14 = tpu.reciprocal %13 {approx = true} : vector<16x1xf32> -> vector<16x1xf32>
    %15 = vector.broadcast %14 : vector<16x1xf32> to vector<16x4xf32>
    %16 = arith.mulf %11, %15 : vector<16x4xf32>
    %17 = arith.truncf %16 : vector<16x4xf32> to vector<16x4xbf16>
    %cst_10 = arith.constant dense<0.000000e+00> : vector<2x16xf32>
    %18 = tpu.matmul %5, %17, %cst_10 {dimension_numbers = #tpu.dot_dimension_numbers<[1], [1], [0], [0], [0, 0, 1, 0], [], []>} : vector<2x4xbf16>, vector<16x4xbf16>, vector<2x16xf32> -> vector<2x16xf32>
    %c0_11 = arith.constant 0 : index
    %c0_12 = arith.constant 0 : index
    %19 = vector.load %arg5[%c0_11, %c0_12] : memref<4x2xbf16, #tpu.memory_space<vmem>>, vector<4x2xbf16>
    %20 = arith.truncf %18 : vector<2x16xf32> to vector<2x16xbf16>
    %cst_13 = arith.constant dense<0.000000e+00> : vector<4x16xf32>
    %21 = tpu.matmul %19, %20, %cst_13 {dimension_numbers = #tpu.dot_dimension_numbers<[1], [0], [0], [1], [0, 0, 1, 1], [], []>} : vector<4x2xbf16>, vector<2x16xbf16>, vector<4x16xf32> -> vector<4x16xf32>
    %c0_14 = arith.constant 0 : index
    %c0_15 = arith.constant 0 : index
    %22 = vector.load %arg6[%c0_14, %c0_15] : memref<4x1xf32, #tpu.memory_space<vmem>>, vector<4x1xf32>
    %23 = vector.broadcast %22 : vector<4x1xf32> to vector<4x16xf32>
    %24 = arith.addf %21, %23 : vector<4x16xf32>
    %25 = arith.truncf %24 : vector<4x16xf32> to vector<4x16xbf16>
    %c0_16 = arith.constant 0 : index
    %c0_17 = arith.constant 0 : index
    %c0_18 = arith.constant 0 : index
    %26 = vector.load %arg7[%c0_16, %c0_17, %c0_18] : memref<1x4x16xbf16, #tpu.memory_space<vmem>>, vector<1x4x16xbf16>
    %27 = vector.shape_cast %26 : vector<1x4x16xbf16> to vector<4x16xbf16>
    %28 = vector.shape_cast %25 : vector<4x16xbf16> to vector<1x4x16xbf16>
    tpu.vector_store %arg7[%c0_16, %c0_17, %c0_18], %28 {strides = array<i32>} : memref<1x4x16xbf16, #tpu.memory_space<vmem>>, vector<1x4x16xbf16>,
    return
  }
  func.func @transform_0(%arg0: i32, %arg1: i32) -> (i32, i32, i32) {
    %c0_i32 = arith.constant 0 : i32
    %c0_i32_0 = arith.constant 0 : i32
    return %arg0, %arg1, %c0_i32 : i32, i32, i32
  }
  func.func @transform_1(%arg0: i32, %arg1: i32) -> (i32, i32, i32) {
    %c0_i32 = arith.constant 0 : i32
    %c0_i32_0 = arith.constant 0 : i32
    %c0_i32_1 = arith.constant 0 : i32
    return %arg0, %c0_i32, %c0_i32_0 : i32, i32, i32
  }
  func.func @transform_2(%arg0: i32, %arg1: i32) -> (i32, i32, i32) {
    %c0_i32 = arith.constant 0 : i32
    %c0_i32_0 = arith.constant 0 : i32
    %c0_i32_1 = arith.constant 0 : i32
    return %arg0, %c0_i32, %c0_i32_0 : i32, i32, i32
  }
  func.func @transform_3(%arg0: i32, %arg1: i32) -> (i32, i32) {
    %c0_i32 = arith.constant 0 : i32
    %c0_i32_0 = arith.constant 0 : i32
    %c0_i32_1 = arith.constant 0 : i32
    return %c0_i32, %c0_i32_0 : i32, i32
  }
  func.func @transform_4(%arg0: i32, %arg1: i32) -> (i32, i32) {
    %c0_i32 = arith.constant 0 : i32
    %c0_i32_0 = arith.constant 0 : i32
    %c0_i32_1 = arith.constant 0 : i32
    return %c0_i32, %c0_i32_0 : i32, i32
  }
  func.func @transform_5(%arg0: i32, %arg1: i32) -> (i32, i32, i32) {
    %c0_i32 = arith.constant 0 : i32
    %c0_i32_0 = arith.constant 0 : i32
    return %arg0, %c0_i32, %arg1 : i32, i32, i32
  }
}

module attributes {stable_mosaic.version = 11 : i64} {
  func.func @_upsample_add_kernel(%arg0: i32, %arg1: memref<1x4x4xbf16, #tpu.memory_space<vmem>>, %arg2: memref<4x16xbf16, #tpu.memory_space<vmem>>, %arg3: memref<16x4xbf16, #tpu.memory_space<vmem>>, %arg4: memref<1x16x16xf32, #tpu.memory_space<vmem>>, %arg5: memref<1x16x16xf32, #tpu.memory_space<vmem>>) attributes {dimension_semantics = [#tpu.dimension_semantics<parallel>], iteration_bounds = array<i64: 8>, scalar_prefetch = 0 : i64, scratch_operands = 0 : i64, tpu.core_type = #tpu.core_type<tc>, window_params = [{transform_indices = @transform_0, window_bounds = array<i64: 1, 4, 4>}, {pipeline_mode = #tpu.pipeline_mode<synchronous>, transform_indices = @transform_1, window_bounds = array<i64: 4, 16>}, {pipeline_mode = #tpu.pipeline_mode<synchronous>, transform_indices = @transform_2, window_bounds = array<i64: 16, 4>}, {transform_indices = @transform_3, window_bounds = array<i64: 1, 16, 16>}, {transform_indices = @transform_4, window_bounds = array<i64: 1, 16, 16>}]} {
    %c0 = arith.constant 0 : index
    %c0_0 = arith.constant 0 : index
    %c0_1 = arith.constant 0 : index
    %0 = vector.load %arg1[%c0, %c0_0, %c0_1] : memref<1x4x4xbf16, #tpu.memory_space<vmem>>, vector<1x4x4xbf16>
    %1 = vector.shape_cast %0 : vector<1x4x4xbf16> to vector<4x4xbf16>
    %c0_2 = arith.constant 0 : index
    %c0_3 = arith.constant 0 : index
    %2 = vector.load %arg2[%c0_2, %c0_3] : memref<4x16xbf16, #tpu.memory_space<vmem>>, vector<4x16xbf16>
    %cst = arith.constant dense<0.000000e+00> : vector<4x16xf32>
    %3 = tpu.matmul %1, %2, %cst {dimension_numbers = #tpu.dot_dimension_numbers<[1], [0], [0], [1], [0, 0, 1, 1], [], []>} : vector<4x4xbf16>, vector<4x16xbf16>, vector<4x16xf32> -> vector<4x16xf32>
    %c0_4 = arith.constant 0 : index
    %c0_5 = arith.constant 0 : index
    %4 = vector.load %arg3[%c0_4, %c0_5] : memref<16x4xbf16, #tpu.memory_space<vmem>>, vector<16x4xbf16>
    %5 = arith.truncf %3 : vector<4x16xf32> to vector<4x16xbf16>
    %cst_6 = arith.constant dense<0.000000e+00> : vector<16x16xf32>
    %6 = tpu.matmul %4, %5, %cst_6 {dimension_numbers = #tpu.dot_dimension_numbers<[1], [0], [0], [1], [0, 0, 1, 1], [], []>} : vector<16x4xbf16>, vector<4x16xbf16>, vector<16x16xf32> -> vector<16x16xf32>
    %c0_7 = arith.constant 0 : index
    %c0_8 = arith.constant 0 : index
    %c0_9 = arith.constant 0 : index
    %7 = vector.load %arg4[%c0_7, %c0_8, %c0_9] : memref<1x16x16xf32, #tpu.memory_space<vmem>>, vector<1x16x16xf32>
    %8 = vector.shape_cast %7 : vector<1x16x16xf32> to vector<16x16xf32>
    %9 = arith.addf %6, %8 : vector<16x16xf32>
    %c0_10 = arith.constant 0 : index
    %c0_11 = arith.constant 0 : index
    %c0_12 = arith.constant 0 : index
    %10 = vector.load %arg5[%c0_10, %c0_11, %c0_12] : memref<1x16x16xf32, #tpu.memory_space<vmem>>, vector<1x16x16xf32>
    %11 = vector.shape_cast %10 : vector<1x16x16xf32> to vector<16x16xf32>
    %12 = vector.shape_cast %9 : vector<16x16xf32> to vector<1x16x16xf32>
    tpu.vector_store %arg5[%c0_10, %c0_11, %c0_12], %12 {strides = array<i32>} : memref<1x16x16xf32, #tpu.memory_space<vmem>>, vector<1x16x16xf32>,
    return
  }
  func.func @transform_0(%arg0: i32) -> (i32, i32, i32) {
    %c0_i32 = arith.constant 0 : i32
    %c0_i32_0 = arith.constant 0 : i32
    %c0_i32_1 = arith.constant 0 : i32
    return %arg0, %c0_i32, %c0_i32_0 : i32, i32, i32
  }
  func.func @transform_1(%arg0: i32) -> (i32, i32) {
    %c0_i32 = arith.constant 0 : i32
    %c0_i32_0 = arith.constant 0 : i32
    %c0_i32_1 = arith.constant 0 : i32
    return %c0_i32, %c0_i32_0 : i32, i32
  }
  func.func @transform_2(%arg0: i32) -> (i32, i32) {
    %c0_i32 = arith.constant 0 : i32
    %c0_i32_0 = arith.constant 0 : i32
    %c0_i32_1 = arith.constant 0 : i32
    return %c0_i32, %c0_i32_0 : i32, i32
  }
  func.func @transform_3(%arg0: i32) -> (i32, i32, i32) {
    %c0_i32 = arith.constant 0 : i32
    %c0_i32_0 = arith.constant 0 : i32
    %c0_i32_1 = arith.constant 0 : i32
    return %arg0, %c0_i32, %c0_i32_0 : i32, i32, i32
  }
  func.func @transform_4(%arg0: i32) -> (i32, i32, i32) {
    %c0_i32 = arith.constant 0 : i32
    %c0_i32_0 = arith.constant 0 : i32
    %c0_i32_1 = arith.constant 0 : i32
    return %arg0, %c0_i32, %c0_i32_0 : i32, i32, i32
  }
}

</mosaic_0001>

<llo_original>
// kernel: adf_forward.4
$region0: #{adf_forward.4}
  #allocation0 [shape = 'u32[]', space=smem, size = 0x4, offset = 0x4, fixed_abs, tag = 'smem constant byte address 0x4 - core index']
  #allocation1 [shape = 'u32[72,128]{1,0:T(1,128)}', space=vmem, size = 0x9000, scoped, tag = 'internal scratch']
  %s0 = inlined_call_operand.vmem [shape: f32[2,4,16], index: 0, kind: input, shape index: {}]
  %s1 = inlined_call_operand.vmem [shape: f32[4,4], index: 1, kind: input, shape index: {}]
  %s2 = inlined_call_operand.vmem [shape: f32[4,1], index: 2, kind: input, shape index: {}]
  %s3 = inlined_call_operand.vmem [shape: bf16[2,4,16], index: 3, kind: output, shape index: {}]
  %s4 = sld [smem:[#allocation0]]
  $region45: #{adf_forward.4} parent=0
    _
  %s6 = ssub.s32 1, %s4
  %s7 = scalar_select 0, %s6, %s4
  loop: start=0, step=1, limit=4
  $region2: #{adf_forward.4} parent=0 // loop_pre_header
    _
  $region3: #{adf_forward.4} parent=0 // loop_header
    %s9 = sphi 0, %s13
    %p10 = scmp.ge.s32.totalorder %s9, 4
    %s16 = sphi 0, %s28
    %s17 = sphi 0, %s24
    %s18 = sphi 0, %s16
    %s19 = sphi 0, %s17
    %s20 = sphi 0, %s18
    %s21 = sphi 0, %s19
    %s33 = sphi 0, %s35
    %s36 = sphi 0, %s33
    %s37 = sphi 0, %s36
    %s53 = sphi 0, %s37
    %s57 = sphi 0, %s57
    %s59 = sphi 0, %s57
    %s60 = sphi 0, %s59
    %s74 = sphi 0, %s60
    %s78 = sphi 0, %s78
    %s80 = sphi 0, %s78
    %s81 = sphi 0, %s80
    %s95 = sphi 0, %s81
    %s103 = sphi 0, %s105
    %s106 = sphi 0, %s103
    %s107 = sphi 0, %s106
    %s123 = sphi 0, %s107
  $region4: #{adf_forward.4} parent=0 // loop_header_branch
    %12 = sbr.rel (%p10) target = $region8
  $region5: #{adf_forward.4} parent=0 // loop_body
    %s14 = ssub.s32 %s9, 1
    %s15 = ssub.s32 %s9, 2
    %s22 = sadd.s32 1, %s17
    %p23 = scmp.ge.s32.totalorder %s22, 1
    %s24 = scalar_select %p23, 0, %s22
    %s25 = sadd.s32 1, %s16
    %s26 = scalar_select %p23, %s25, %s16
    %p27 = scmp.ge.s32.totalorder %s26, 2
    %s28 = scalar_select %p27, 0, %s26
    %s29 = ssub.s32 %s16, %s28
    %s30 = ssub.s32 %s17, %s24
    %s31 = sor.u32 %s29, %s30
    %p32 = scmp.eq.s32.totalorder %s31, 0
    %s34 = sadd.s32 %s33, 1
    %s35 = scalar_select %p32, %s33, %s34
    %p38 = pneg %p32
    %p39 = scmp.eq.s32.totalorder %s9, 1
    %p40 = por %p38, %p39
    %p41 = scmp.ne.s32.totalorder %s33, %s36
    %p42 = scmp.eq.s32.totalorder %s9, 0
    %p43 = por %p41, %p42
    %p44 = scmp.ne.s32.totalorder %s33, %s36
    %p45 = scmp.eq.s32.totalorder %s14, 1
    %p46 = por %p44, %p45
    %p47 = scmp.ne.s32.totalorder %s36, %s37
    %p48 = scmp.eq.s32.totalorder %s14, 0
    %p49 = por %p47, %p48
    %p50 = scmp.ne.s32.totalorder %s36, %s37
    %p51 = scmp.eq.s32.totalorder %s15, 1
    %p52 = por %p50, %p51
    %p54 = scmp.ne.s32.totalorder %s37, %s53
    %p55 = scmp.eq.s32.totalorder %s15, 0
    %p56 = por %p54, %p55
    %s58 = sadd.s32 %s57, 1
    %p61 = scmp.eq.s32.totalorder %s9, 1
    %p62 = scmp.ne.s32.totalorder %s57, %s59
    %p63 = scmp.eq.s32.totalorder %s9, 0
    %p64 = por %p62, %p63
    %p65 = scmp.ne.s32.totalorder %s57, %s59
    %p66 = scmp.eq.s32.totalorder %s14, 1
    %p67 = por %p65, %p66
    %p68 = scmp.ne.s32.totalorder %s59, %s60
    %p69 = scmp.eq.s32.totalorder %s14, 0
    %p70 = por %p68, %p69
    %p71 = scmp.ne.s32.totalorder %s59, %s60
    %p72 = scmp.eq.s32.totalorder %s15, 1
    %p73 = por %p71, %p72
    %p75 = scmp.ne.s32.totalorder %s60, %s74
    %p76 = scmp.eq.s32.totalorder %s15, 0
    %p77 = por %p75, %p76
    %s79 = sadd.s32 %s78, 1
    %p82 = scmp.eq.s32.totalorder %s9, 1
    %p83 = scmp.ne.s32.totalorder %s78, %s80
    %p84 = scmp.eq.s32.totalorder %s9, 0
    %p85 = por %p83, %p84
    %p86 = scmp.ne.s32.totalorder %s78, %s80
    %p87 = scmp.eq.s32.totalorder %s14, 1
    %p88 = por %p86, %p87
    %p89 = scmp.ne.s32.totalorder %s80, %s81
    %p90 = scmp.eq.s32.totalorder %s14, 0
    %p91 = por %p89, %p90
    %p92 = scmp.ne.s32.totalorder %s80, %s81
    %p93 = scmp.eq.s32.totalorder %s15, 1
    %p94 = por %p92, %p93
    %p96 = scmp.ne.s32.totalorder %s81, %s95
    %p97 = scmp.eq.s32.totalorder %s15, 0
    %p98 = por %p96, %p97
    %s99 = ssub.s32 %s16, %s28
    %s100 = ssub.s32 %s17, %s24
    %s101 = sor.u32 %s99, %s100
    %p102 = scmp.eq.s32.totalorder %s101, 0
    %s104 = sadd.s32 %s103, 1
    %s105 = scalar_select %p102, %s103, %s104
    %p108 = pneg %p102
    %p109 = scmp.eq.s32.totalorder %s9, 1
    %p110 = por %p108, %p109
    %p111 = scmp.ne.s32.totalorder %s103, %s106
    %p112 = scmp.eq.s32.totalorder %s9, 0
    %p113 = por %p111, %p112
    %p114 = scmp.ne.s32.totalorder %s103, %s106
    %p115 = scmp.eq.s32.totalorder %s14, 1
    %p116 = por %p114, %p115
    %p117 = scmp.ne.s32.totalorder %s106, %s107
    %p118 = scmp.eq.s32.totalorder %s14, 0
    %p119 = por %p117, %p118
    %p120 = scmp.ne.s32.totalorder %s106, %s107
    %p121 = scmp.eq.s32.totalorder %s15, 1
    %p122 = por %p120, %p121
    %p124 = scmp.ne.s32.totalorder %s107, %s123
    %p125 = scmp.eq.s32.totalorder %s15, 0
    %p126 = por %p124, %p125
    %p127 = scmp.le.s32.totalorder 1, %s9
    %p128 = scmp.lt.s32.totalorder %s9, 3
    %p129 = pnand %p127, %p128
    %p130 = pneg %p129
    // Predicated region
    $region9: #{adf_forward.4} parent=5 // pred_check
      _
    $region10: #{adf_forward.4} parent=5 // pred_check_branch
      %132 = sbr.rel (%p129) target = $region12
    $region11: #{adf_forward.4} parent=5 // pred_region
      %s133 = ssub.s32 %s9, 1
      // Predicated region
      $region13: #{adf_forward.4} parent=11 // pred_check
        %p134 = pneg %p70
      $region14: #{adf_forward.4} parent=11 // pred_check_branch
        %136 = sbr.rel (%p134) target = $region16
      $region15: #{adf_forward.4} parent=11 // pred_region
        _
      $region16: #{adf_forward.4} parent=11 // pred_fallthru
        _
      // Predicated region
      $region17: #{adf_forward.4} parent=11 // pred_check
        %p137 = pneg %p91
      $region18: #{adf_forward.4} parent=11 // pred_check_branch
        %139 = sbr.rel (%p137) target = $region20
      $region19: #{adf_forward.4} parent=11 // pred_region
        _
      $region20: #{adf_forward.4} parent=11 // pred_fallthru
        _
    $region12: #{adf_forward.4} parent=5 // pred_fallthru
      _
    %p140 = scmp.lt.s32.totalorder %s9, 2
    // Predicated region
    $region21: #{adf_forward.4} parent=5 // pred_check
      %p141 = pneg %p140
    $region22: #{adf_forward.4} parent=5 // pred_check_branch
      %143 = sbr.rel (%p141) target = $region24
    $region23: #{adf_forward.4} parent=5 // pred_region
      // Predicated region
      $region25: #{adf_forward.4} parent=23 // pred_check
        %p144 = pneg %p43
      $region26: #{adf_forward.4} parent=23 // pred_check_branch
        %146 = sbr.rel (%p144) target = $region28
      $region27: #{adf_forward.4} parent=23 // pred_region
        %p147 = scmp.lt.s32.totalorder %s16, 1
        %s148 = scalar_select %p147, %s16, 1
        %p149 = scmp.lt.s32.totalorder %s17, 0
        %s150 = scalar_select %p149, %s17, 0
        %s151 = sadd.s32 %s150, %s148
        %s152 = smul.addr %s151, 4
        %s153 = scalar_lea.vmem %s0, %s152
      $region28: #{adf_forward.4} parent=23 // pred_fallthru
        _
    $region24: #{adf_forward.4} parent=5 // pred_fallthru
      _
    %p154 = scmp.le.s32.totalorder 1, %s9
    %p155 = scmp.lt.s32.totalorder %s9, 3
    %p156 = pnand %p154, %p155
    %p157 = pneg %p156
    // Predicated region
    $region29: #{adf_forward.4} parent=5 // pred_check
      _
    $region30: #{adf_forward.4} parent=5 // pred_check_branch
      %159 = sbr.rel (%p156) target = $region32
    $region31: #{adf_forward.4} parent=5 // pred_region
      %s160 = ssub.s32 %s9, 1
      %p161 = scmp.lt.s32.totalorder %s18, 1
      %s162 = scalar_select %p161, %s18, 1
      %p163 = scmp.lt.s32.totalorder %s19, 0
      %s164 = scalar_select %p163, %s19, 0
      %s165 = sadd.s32 %s164, %s162
      %s166 = smul.addr %s165, 4
      %s167 = scalar_lea.vmem %s0, %s166
      %p168 = pneg %p49
      %p169 = pneg %p46
      %p170 = pneg %p70
      %p171 = pneg %p67
      %p172 = pneg %p91
      %p173 = pneg %p88
      %p174 = pneg %p119
      %p175 = pneg %p116
      %p176 = scmp.lt.s32.totalorder %s18, 1
      %s177 = scalar_select %p176, %s18, 1
      %p178 = scmp.lt.s32.totalorder %s19, 0
      %s179 = scalar_select %p178, %s19, 0
      %s180 = sadd.s32 %s179, %s177
      %s181 = smul.addr %s180, 2
      %s182 = scalar_lea.vmem %s3, %s181
      %p183 = scmp.lt.s32.totalorder %s18, 1
      %s184 = scalar_select %p183, %s18, 1
      %p185 = scmp.lt.s32.totalorder %s19, 0
      %s186 = scalar_select %p185, %s19, 0
      %s187 = sadd.s32 %s186, %s184
      %s188 = smul.addr %s187, 4
      %s189 = scalar_lea.vmem %s0, %s188
      %p190 = scmp.lt.s32.totalorder %s18, 1
      %s191 = scalar_select %p190, %s18, 1
      %p192 = scmp.lt.s32.totalorder %s19, 0
      %s193 = scalar_select %p192, %s19, 0
      %s194 = sadd.s32 %s193, %s191
      %s195 = smul.addr %s194, 2
      %s196 = scalar_lea.vmem %s3, %s195
      %v197 = vld [vmem:[%s1] sm:$0xf]
      %v198 = vld [vmem:[%s189] sm:$0xf]
      %v199 = vld [vmem:[%s2] sm:$0xf]
      %201 = vset.pattern.permute.xlu0 0
      %202 = vperm.xlu0 %201, %v199
      %v203 = vpop.permute.xlu0 %202
      %vm205 = vcmask 31744
      %v207 = vsel %vm205, %v197, 0
      %vm209 = vcmask 1043456
      %v211 = vsel %vm209, %v198, 0
      %213 = vmatpush.msra.mxu0 0.0
      %214 = vmatpush.msra.mxu0 0.0
      %215 = vmatpush.msra.mxu0 0.0
      %216 = vmatpush.msra.mxu0 0.0
      %217 = vmatpush.msra.mxu0 0.0
      %218 = vmatpush.msra.mxu0 0.0
      %219 = vmatpush.msra.mxu0 0.0
      %220 = vmatpush.msra.mxu0 0.0
      %221 = vmatpush.msra.mxu0 0.0
      %222 = vmatpush.msra.mxu0 0.0
      %223 = vmatpush.msra.mxu0 0.0
      %224 = vmatpush.msra.mxu0 0.0
      %225 = vmatpush.msra.mxu0 0.0
      %226 = vmatpush.msra.mxu0 0.0
      %227 = vmatpush.msra.mxu0 0.0
      %228 = vmatpush.msra.mxu0 %v211
      %229 = vmatmul.f32.gmra.mxu0 %v207
      %v230 = vpop.f32.mrf.mxu0
      %v231 = vadd.f32 %v203, %v230
      %232 = vdwg.mxu0
      %v233 = vpack.c.bf16 %v231, %v231
      %vm234 = vcmask 123904
      %235 = vst.msk [vmem:[%s196] sm:$0x3] %vm234, %v233
      %p236 = scmp.lt.s32.totalorder %s18, 1
      %s237 = scalar_select %p236, %s18, 1
      %p238 = scmp.lt.s32.totalorder %s19, 0
      %s239 = scalar_select %p238, %s19, 0
      %s240 = sadd.s32 %s239, %s237
      %s241 = smul.addr %s240, 2
      %s242 = scalar_lea.vmem %s3, %s241
      // Predicated region
      $region33: #{adf_forward.4} parent=31 // pred_check
        %p243 = pneg %p116
      $region34: #{adf_forward.4} parent=31 // pred_check_branch
        %245 = sbr.rel (%p243) target = $region36
      $region35: #{adf_forward.4} parent=31 // pred_region
        _
      $region36: #{adf_forward.4} parent=31 // pred_fallthru
        _
    $region32: #{adf_forward.4} parent=5 // pred_fallthru
      _
    %p246 = scmp.le.s32.totalorder 2, %s9
    // Predicated region
    $region37: #{adf_forward.4} parent=5 // pred_check
      %p247 = pneg %p246
    $region38: #{adf_forward.4} parent=5 // pred_check_branch
      %249 = sbr.rel (%p247) target = $region40
    $region39: #{adf_forward.4} parent=5 // pred_region
      %s250 = ssub.s32 %s9, 2
      // Predicated region
      $region41: #{adf_forward.4} parent=39 // pred_check
        %p251 = pneg %p122
      $region42: #{adf_forward.4} parent=39 // pred_check_branch
        %253 = sbr.rel (%p251) target = $region44
      $region43: #{adf_forward.4} parent=39 // pred_region
        %p254 = scmp.lt.s32.totalorder %s20, 1
        %s255 = scalar_select %p254, %s20, 1
        %p256 = scmp.lt.s32.totalorder %s21, 0
        %s257 = scalar_select %p256, %s21, 0
        %s258 = sadd.s32 %s257, %s255
        %s259 = smul.addr %s258, 2
        %s260 = scalar_lea.vmem %s3, %s259
      $region44: #{adf_forward.4} parent=39 // pred_fallthru
        _
    $region40: #{adf_forward.4} parent=5 // pred_fallthru
      _
  $region6: #{adf_forward.4} parent=0 // loop_footer
    %s13 = sadd.s32 1, %s9
  $region7: #{adf_forward.4} parent=0 // loop_footer_branch
    %8 = sbr.rel target = $region3
  $region8: #{adf_forward.4} parent=0 // loop_exit
    _

// kernel: adf_forward.5
$region0: #{adf_forward.5}
  #allocation0 [shape = 'u32[]', space=smem, size = 0x4, offset = 0x4, fixed_abs, tag = 'smem constant byte address 0x4 - core index']
  #allocation1 [shape = 'u32[72,128]{1,0:T(1,128)}', space=vmem, size = 0x9000, scoped, tag = 'internal scratch']
  %s0 = inlined_call_operand.vmem [shape: f32[2,4,16], index: 0, kind: input, shape index: {}]
  %s1 = inlined_call_operand.vmem [shape: f32[2,4], index: 1, kind: input, shape index: {}]
  %s2 = inlined_call_operand.vmem [shape: f32[2,1], index: 2, kind: input, shape index: {}]
  %s3 = inlined_call_operand.vmem [shape: bf16[2,2,16], index: 3, kind: output, shape index: {}]
  %s4 = sld [smem:[#allocation0]]
  $region45: #{adf_forward.5} parent=0
    _
  %s6 = ssub.s32 1, %s4
  %s7 = scalar_select 0, %s6, %s4
  loop: start=0, step=1, limit=4
  $region2: #{adf_forward.5} parent=0 // loop_pre_header
    _
  $region3: #{adf_forward.5} parent=0 // loop_header
    %s9 = sphi 0, %s13
    %p10 = scmp.ge.s32.totalorder %s9, 4
    %s16 = sphi 0, %s28
    %s17 = sphi 0, %s24
    %s18 = sphi 0, %s16
    %s19 = sphi 0, %s17
    %s20 = sphi 0, %s18
    %s21 = sphi 0, %s19
    %s33 = sphi 0, %s35
    %s36 = sphi 0, %s33
    %s37 = sphi 0, %s36
    %s53 = sphi 0, %s37
    %s57 = sphi 0, %s57
    %s59 = sphi 0, %s57
    %s60 = sphi 0, %s59
    %s74 = sphi 0, %s60
    %s78 = sphi 0, %s78
    %s80 = sphi 0, %s78
    %s81 = sphi 0, %s80
    %s95 = sphi 0, %s81
    %s103 = sphi 0, %s105
    %s106 = sphi 0, %s103
    %s107 = sphi 0, %s106
    %s123 = sphi 0, %s107
  $region4: #{adf_forward.5} parent=0 // loop_header_branch
    %12 = sbr.rel (%p10) target = $region8
  $region5: #{adf_forward.5} parent=0 // loop_body
    %s14 = ssub.s32 %s9, 1
    %s15 = ssub.s32 %s9, 2
    %s22 = sadd.s32 1, %s17
    %p23 = scmp.ge.s32.totalorder %s22, 1
    %s24 = scalar_select %p23, 0, %s22
    %s25 = sadd.s32 1, %s16
    %s26 = scalar_select %p23, %s25, %s16
    %p27 = scmp.ge.s32.totalorder %s26, 2
    %s28 = scalar_select %p27, 0, %s26
    %s29 = ssub.s32 %s16, %s28
    %s30 = ssub.s32 %s17, %s24
    %s31 = sor.u32 %s29, %s30
    %p32 = scmp.eq.s32.totalorder %s31, 0
    %s34 = sadd.s32 %s33, 1
    %s35 = scalar_select %p32, %s33, %s34
    %p38 = pneg %p32
    %p39 = scmp.eq.s32.totalorder %s9, 1
    %p40 = por %p38, %p39
    %p41 = scmp.ne.s32.totalorder %s33, %s36
    %p42 = scmp.eq.s32.totalorder %s9, 0
    %p43 = por %p41, %p42
    %p44 = scmp.ne.s32.totalorder %s33, %s36
    %p45 = scmp.eq.s32.totalorder %s14, 1
    %p46 = por %p44, %p45
    %p47 = scmp.ne.s32.totalorder %s36, %s37
    %p48 = scmp.eq.s32.totalorder %s14, 0
    %p49 = por %p47, %p48
    %p50 = scmp.ne.s32.totalorder %s36, %s37
    %p51 = scmp.eq.s32.totalorder %s15, 1
    %p52 = por %p50, %p51
    %p54 = scmp.ne.s32.totalorder %s37, %s53
    %p55 = scmp.eq.s32.totalorder %s15, 0
    %p56 = por %p54, %p55
    %s58 = sadd.s32 %s57, 1
    %p61 = scmp.eq.s32.totalorder %s9, 1
    %p62 = scmp.ne.s32.totalorder %s57, %s59
    %p63 = scmp.eq.s32.totalorder %s9, 0
    %p64 = por %p62, %p63
    %p65 = scmp.ne.s32.totalorder %s57, %s59
    %p66 = scmp.eq.s32.totalorder %s14, 1
    %p67 = por %p65, %p66
    %p68 = scmp.ne.s32.totalorder %s59, %s60
    %p69 = scmp.eq.s32.totalorder %s14, 0
    %p70 = por %p68, %p69
    %p71 = scmp.ne.s32.totalorder %s59, %s60
    %p72 = scmp.eq.s32.totalorder %s15, 1
    %p73 = por %p71, %p72
    %p75 = scmp.ne.s32.totalorder %s60, %s74
    %p76 = scmp.eq.s32.totalorder %s15, 0
    %p77 = por %p75, %p76
    %s79 = sadd.s32 %s78, 1
    %p82 = scmp.eq.s32.totalorder %s9, 1
    %p83 = scmp.ne.s32.totalorder %s78, %s80
    %p84 = scmp.eq.s32.totalorder %s9, 0
    %p85 = por %p83, %p84
    %p86 = scmp.ne.s32.totalorder %s78, %s80
    %p87 = scmp.eq.s32.totalorder %s14, 1
    %p88 = por %p86, %p87
    %p89 = scmp.ne.s32.totalorder %s80, %s81
    %p90 = scmp.eq.s32.totalorder %s14, 0
    %p91 = por %p89, %p90
    %p92 = scmp.ne.s32.totalorder %s80, %s81
    %p93 = scmp.eq.s32.totalorder %s15, 1
    %p94 = por %p92, %p93
    %p96 = scmp.ne.s32.totalorder %s81, %s95
    %p97 = scmp.eq.s32.totalorder %s15, 0
    %p98 = por %p96, %p97
    %s99 = ssub.s32 %s16, %s28
    %s100 = ssub.s32 %s17, %s24
    %s101 = sor.u32 %s99, %s100
    %p102 = scmp.eq.s32.totalorder %s101, 0
    %s104 = sadd.s32 %s103, 1
    %s105 = scalar_select %p102, %s103, %s104
    %p108 = pneg %p102
    %p109 = scmp.eq.s32.totalorder %s9, 1
    %p110 = por %p108, %p109
    %p111 = scmp.ne.s32.totalorder %s103, %s106
    %p112 = scmp.eq.s32.totalorder %s9, 0
    %p113 = por %p111, %p112
    %p114 = scmp.ne.s32.totalorder %s103, %s106
    %p115 = scmp.eq.s32.totalorder %s14, 1
    %p116 = por %p114, %p115
    %p117 = scmp.ne.s32.totalorder %s106, %s107
    %p118 = scmp.eq.s32.totalorder %s14, 0
    %p119 = por %p117, %p118
    %p120 = scmp.ne.s32.totalorder %s106, %s107
    %p121 = scmp.eq.s32.totalorder %s15, 1
    %p122 = por %p120, %p121
    %p124 = scmp.ne.s32.totalorder %s107, %s123
    %p125 = scmp.eq.s32.totalorder %s15, 0
    %p126 = por %p124, %p125
    %p127 = scmp.le.s32.totalorder 1, %s9
    %p128 = scmp.lt.s32.totalorder %s9, 3
    %p129 = pnand %p127, %p128
    %p130 = pneg %p129
    // Predicated region
    $region9: #{adf_forward.5} parent=5 // pred_check
      _
    $region10: #{adf_forward.5} parent=5 // pred_check_branch
      %132 = sbr.rel (%p129) target = $region12
    $region11: #{adf_forward.5} parent=5 // pred_region
      %s133 = ssub.s32 %s9, 1
      // Predicated region
      $region13: #{adf_forward.5} parent=11 // pred_check
        %p134 = pneg %p70
      $region14: #{adf_forward.5} parent=11 // pred_check_branch
        %136 = sbr.rel (%p134) target = $region16
      $region15: #{adf_forward.5} parent=11 // pred_region
        _
      $region16: #{adf_forward.5} parent=11 // pred_fallthru
        _
      // Predicated region
      $region17: #{adf_forward.5} parent=11 // pred_check
        %p137 = pneg %p91
      $region18: #{adf_forward.5} parent=11 // pred_check_branch
        %139 = sbr.rel (%p137) target = $region20
      $region19: #{adf_forward.5} parent=11 // pred_region
        _
      $region20: #{adf_forward.5} parent=11 // pred_fallthru
        _
    $region12: #{adf_forward.5} parent=5 // pred_fallthru
      _
    %p140 = scmp.lt.s32.totalorder %s9, 2
    // Predicated region
    $region21: #{adf_forward.5} parent=5 // pred_check
      %p141 = pneg %p140
    $region22: #{adf_forward.5} parent=5 // pred_check_branch
      %143 = sbr.rel (%p141) target = $region24
    $region23: #{adf_forward.5} parent=5 // pred_region
      // Predicated region
      $region25: #{adf_forward.5} parent=23 // pred_check
        %p144 = pneg %p43
      $region26: #{adf_forward.5} parent=23 // pred_check_branch
        %146 = sbr.rel (%p144) target = $region28
      $region27: #{adf_forward.5} parent=23 // pred_region
        %p147 = scmp.lt.s32.totalorder %s16, 1
        %s148 = scalar_select %p147, %s16, 1
        %p149 = scmp.lt.s32.totalorder %s17, 0
        %s150 = scalar_select %p149, %s17, 0
        %s151 = sadd.s32 %s150, %s148
        %s152 = smul.addr %s151, 4
        %s153 = scalar_lea.vmem %s0, %s152
      $region28: #{adf_forward.5} parent=23 // pred_fallthru
        _
    $region24: #{adf_forward.5} parent=5 // pred_fallthru
      _
    %p154 = scmp.le.s32.totalorder 1, %s9
    %p155 = scmp.lt.s32.totalorder %s9, 3
    %p156 = pnand %p154, %p155
    %p157 = pneg %p156
    // Predicated region
    $region29: #{adf_forward.5} parent=5 // pred_check
      _
    $region30: #{adf_forward.5} parent=5 // pred_check_branch
      %159 = sbr.rel (%p156) target = $region32
    $region31: #{adf_forward.5} parent=5 // pred_region
      %s160 = ssub.s32 %s9, 1
      %p161 = scmp.lt.s32.totalorder %s18, 1
      %s162 = scalar_select %p161, %s18, 1
      %p163 = scmp.lt.s32.totalorder %s19, 0
      %s164 = scalar_select %p163, %s19, 0
      %s165 = sadd.s32 %s164, %s162
      %s166 = smul.addr %s165, 4
      %s167 = scalar_lea.vmem %s0, %s166
      %p168 = pneg %p49
      %p169 = pneg %p46
      %p170 = pneg %p70
      %p171 = pneg %p67
      %p172 = pneg %p91
      %p173 = pneg %p88
      %p174 = pneg %p119
      %p175 = pneg %p116
      %p176 = scmp.lt.s32.totalorder %s18, 1
      %s177 = scalar_select %p176, %s18, 1
      %p178 = scmp.lt.s32.totalorder %s19, 0
      %s179 = scalar_select %p178, %s19, 0
      %s180 = sadd.s32 %s179, %s177
      %s181 = scalar_lea.vmem %s3, %s180
      %p182 = scmp.lt.s32.totalorder %s18, 1
      %s183 = scalar_select %p182, %s18, 1
      %p184 = scmp.lt.s32.totalorder %s19, 0
      %s185 = scalar_select %p184, %s19, 0
      %s186 = sadd.s32 %s185, %s183
      %s187 = smul.addr %s186, 4
      %s188 = scalar_lea.vmem %s0, %s187
      %p189 = scmp.lt.s32.totalorder %s18, 1
      %s190 = scalar_select %p189, %s18, 1
      %p191 = scmp.lt.s32.totalorder %s19, 0
      %s192 = scalar_select %p191, %s19, 0
      %s193 = sadd.s32 %s192, %s190
      %s194 = scalar_lea.vmem %s3, %s193
      %v195 = vld [vmem:[%s1] sm:$0x3]
      %v196 = vld [vmem:[%s188] sm:$0xf]
      %v197 = vld [vmem:[%s2] sm:$0x3]
      %199 = vset.pattern.permute.xlu0 0
      %200 = vperm.xlu0 %199, %v197
      %v201 = vpop.permute.xlu0 %200
      %vm203 = vcmask 31744
      %v205 = vsel %vm203, %v195, 0
      %vm207 = vcmask 1043456
      %v209 = vsel %vm207, %v196, 0
      %211 = vmatpush.msra.mxu0 0.0
      %212 = vmatpush.msra.mxu0 0.0
      %213 = vmatpush.msra.mxu0 0.0
      %214 = vmatpush.msra.mxu0 0.0
      %215 = vmatpush.msra.mxu0 0.0
      %216 = vmatpush.msra.mxu0 0.0
      %217 = vmatpush.msra.mxu0 0.0
      %218 = vmatpush.msra.mxu0 0.0
      %219 = vmatpush.msra.mxu0 0.0
      %220 = vmatpush.msra.mxu0 0.0
      %221 = vmatpush.msra.mxu0 0.0
      %222 = vmatpush.msra.mxu0 0.0
      %223 = vmatpush.msra.mxu0 0.0
      %224 = vmatpush.msra.mxu0 0.0
      %225 = vmatpush.msra.mxu0 0.0
      %226 = vmatpush.msra.mxu0 %v209
      %227 = vmatmul.f32.gmra.mxu0 %v205
      %v228 = vpop.f32.mrf.mxu0
      %v229 = vadd.f32 %v201, %v228
      %230 = vdwg.mxu0
      %v231 = vpack.c.bf16 %v229, %v229
      %vm232 = vcmask 122880
      %233 = vst.msk [vmem:[%s194] sm:$0x1] %vm232, %v231
      %p234 = scmp.lt.s32.totalorder %s18, 1
      %s235 = scalar_select %p234, %s18, 1
      %p236 = scmp.lt.s32.totalorder %s19, 0
      %s237 = scalar_select %p236, %s19, 0
      %s238 = sadd.s32 %s237, %s235
      %s239 = scalar_lea.vmem %s3, %s238
      // Predicated region
      $region33: #{adf_forward.5} parent=31 // pred_check
        %p240 = pneg %p116
      $region34: #{adf_forward.5} parent=31 // pred_check_branch
        %242 = sbr.rel (%p240) target = $region36
      $region35: #{adf_forward.5} parent=31 // pred_region
        _
      $region36: #{adf_forward.5} parent=31 // pred_fallthru
        _
    $region32: #{adf_forward.5} parent=5 // pred_fallthru
      _
    %p243 = scmp.le.s32.totalorder 2, %s9
    // Predicated region
    $region37: #{adf_forward.5} parent=5 // pred_check
      %p244 = pneg %p243
    $region38: #{adf_forward.5} parent=5 // pred_check_branch
      %246 = sbr.rel (%p244) target = $region40
    $region39: #{adf_forward.5} parent=5 // pred_region
      %s247 = ssub.s32 %s9, 2
      // Predicated region
      $region41: #{adf_forward.5} parent=39 // pred_check
        %p248 = pneg %p122
      $region42: #{adf_forward.5} parent=39 // pred_check_branch
        %250 = sbr.rel (%p248) target = $region44
      $region43: #{adf_forward.5} parent=39 // pred_region
        %p251 = scmp.lt.s32.totalorder %s20, 1
        %s252 = scalar_select %p251, %s20, 1
        %p253 = scmp.lt.s32.totalorder %s21, 0
        %s254 = scalar_select %p253, %s21, 0
        %s255 = sadd.s32 %s254, %s252
        %s256 = scalar_lea.vmem %s3, %s255
      $region44: #{adf_forward.5} parent=39 // pred_fallthru
        _
    $region40: #{adf_forward.5} parent=5 // pred_fallthru
      _
  $region6: #{adf_forward.5} parent=0 // loop_footer
    %s13 = sadd.s32 1, %s9
  $region7: #{adf_forward.5} parent=0 // loop_footer_branch
    %8 = sbr.rel target = $region3
  $region8: #{adf_forward.5} parent=0 // loop_exit
    _

// kernel: adf_forward.6
$region0: #{adf_forward.6}
  #allocation0 [shape = 'u32[]', space=smem, size = 0x4, offset = 0x4, fixed_abs, tag = 'smem constant byte address 0x4 - core index']
  #allocation1 [shape = 'u32[72,128]{1,0:T(1,128)}', space=vmem, size = 0x9000, scoped, tag = 'internal scratch']
  %s0 = inlined_call_operand.vmem [shape: bf16[2,16,2], index: 0, kind: input, shape index: {}]
  %s1 = inlined_call_operand.vmem [shape: bf16[2,2,4], index: 1, kind: input, shape index: {}]
  %s2 = inlined_call_operand.vmem [shape: bf16[2,2,4], index: 2, kind: input, shape index: {}]
  %s3 = inlined_call_operand.vmem [shape: bf16[4,2], index: 3, kind: input, shape index: {}]
  %s4 = inlined_call_operand.vmem [shape: f32[4,1], index: 4, kind: input, shape index: {}]
  %s5 = inlined_call_operand.vmem [shape: bf16[2,4,16], index: 5, kind: output, shape index: {}]
  %s6 = sld [smem:[#allocation0]]
  $region53: #{adf_forward.6} parent=0
    _
  %s8 = ssub.s32 1, %s6
  %s9 = scalar_select 0, %s8, %s6
  loop: start=0, step=1, limit=4
  $region2: #{adf_forward.6} parent=0 // loop_pre_header
    _
  $region3: #{adf_forward.6} parent=0 // loop_header
    %s11 = sphi 0, %s15
    %p12 = scmp.ge.s32.totalorder %s11, 4
    %s18 = sphi 0, %s30
    %s19 = sphi 0, %s26
    %s20 = sphi 0, %s18
    %s21 = sphi 0, %s19
    %s22 = sphi 0, %s20
    %s23 = sphi 0, %s21
    %s35 = sphi 0, %s37
    %s38 = sphi 0, %s35
    %s39 = sphi 0, %s38
    %s55 = sphi 0, %s39
    %s61 = sphi 0, %s63
    %s64 = sphi 0, %s61
    %s65 = sphi 0, %s64
    %s81 = sphi 0, %s65
    %s87 = sphi 0, %s89
    %s90 = sphi 0, %s87
    %s91 = sphi 0, %s90
    %s107 = sphi 0, %s91
    %s111 = sphi 0, %s111
    %s113 = sphi 0, %s111
    %s114 = sphi 0, %s113
    %s128 = sphi 0, %s114
    %s132 = sphi 0, %s132
    %s134 = sphi 0, %s132
    %s135 = sphi 0, %s134
    %s149 = sphi 0, %s135
    %s157 = sphi 0, %s159
    %s160 = sphi 0, %s157
    %s161 = sphi 0, %s160
    %s177 = sphi 0, %s161
  $region4: #{adf_forward.6} parent=0 // loop_header_branch
    %14 = sbr.rel (%p12) target = $region8
  $region5: #{adf_forward.6} parent=0 // loop_body
    %s16 = ssub.s32 %s11, 1
    %s17 = ssub.s32 %s11, 2
    %s24 = sadd.s32 1, %s19
    %p25 = scmp.ge.s32.totalorder %s24, 1
    %s26 = scalar_select %p25, 0, %s24
    %s27 = sadd.s32 1, %s18
    %s28 = scalar_select %p25, %s27, %s18
    %p29 = scmp.ge.s32.totalorder %s28, 2
    %s30 = scalar_select %p29, 0, %s28
    %s31 = ssub.s32 %s18, %s30
    %s32 = ssub.s32 %s19, %s26
    %s33 = sor.u32 %s31, %s32
    %p34 = scmp.eq.s32.totalorder %s33, 0
    %s36 = sadd.s32 %s35, 1
    %s37 = scalar_select %p34, %s35, %s36
    %p40 = pneg %p34
    %p41 = scmp.eq.s32.totalorder %s11, 1
    %p42 = por %p40, %p41
    %p43 = scmp.ne.s32.totalorder %s35, %s38
    %p44 = scmp.eq.s32.totalorder %s11, 0
    %p45 = por %p43, %p44
    %p46 = scmp.ne.s32.totalorder %s35, %s38
    %p47 = scmp.eq.s32.totalorder %s16, 1
    %p48 = por %p46, %p47
    %p49 = scmp.ne.s32.totalorder %s38, %s39
    %p50 = scmp.eq.s32.totalorder %s16, 0
    %p51 = por %p49, %p50
    %p52 = scmp.ne.s32.totalorder %s38, %s39
    %p53 = scmp.eq.s32.totalorder %s17, 1
    %p54 = por %p52, %p53
    %p56 = scmp.ne.s32.totalorder %s39, %s55
    %p57 = scmp.eq.s32.totalorder %s17, 0
    %p58 = por %p56, %p57
    %s59 = ssub.s32 %s18, %s30
    %p60 = scmp.eq.s32.totalorder %s59, 0
    %s62 = sadd.s32 %s61, 1
    %s63 = scalar_select %p60, %s61, %s62
    %p66 = pneg %p60
    %p67 = scmp.eq.s32.totalorder %s11, 1
    %p68 = por %p66, %p67
    %p69 = scmp.ne.s32.totalorder %s61, %s64
    %p70 = scmp.eq.s32.totalorder %s11, 0
    %p71 = por %p69, %p70
    %p72 = scmp.ne.s32.totalorder %s61, %s64
    %p73 = scmp.eq.s32.totalorder %s16, 1
    %p74 = por %p72, %p73
    %p75 = scmp.ne.s32.totalorder %s64, %s65
    %p76 = scmp.eq.s32.totalorder %s16, 0
    %p77 = por %p75, %p76
    %p78 = scmp.ne.s32.totalorder %s64, %s65
    %p79 = scmp.eq.s32.totalorder %s17, 1
    %p80 = por %p78, %p79
    %p82 = scmp.ne.s32.totalorder %s65, %s81
    %p83 = scmp.eq.s32.totalorder %s17, 0
    %p84 = por %p82, %p83
    %s85 = ssub.s32 %s18, %s30
    %p86 = scmp.eq.s32.totalorder %s85, 0
    %s88 = sadd.s32 %s87, 1
    %s89 = scalar_select %p86, %s87, %s88
    %p92 = pneg %p86
    %p93 = scmp.eq.s32.totalorder %s11, 1
    %p94 = por %p92, %p93
    %p95 = scmp.ne.s32.totalorder %s87, %s90
    %p96 = scmp.eq.s32.totalorder %s11, 0
    %p97 = por %p95, %p96
    %p98 = scmp.ne.s32.totalorder %s87, %s90
    %p99 = scmp.eq.s32.totalorder %s16, 1
    %p100 = por %p98, %p99
    %p101 = scmp.ne.s32.totalorder %s90, %s91
    %p102 = scmp.eq.s32.totalorder %s16, 0
    %p103 = por %p101, %p102
    %p104 = scmp.ne.s32.totalorder %s90, %s91
    %p105 = scmp.eq.s32.totalorder %s17, 1
    %p106 = por %p104, %p105
    %p108 = scmp.ne.s32.totalorder %s91, %s107
    %p109 = scmp.eq.s32.totalorder %s17, 0
    %p110 = por %p108, %p109
    %s112 = sadd.s32 %s111, 1
    %p115 = scmp.eq.s32.totalorder %s11, 1
    %p116 = scmp.ne.s32.totalorder %s111, %s113
    %p117 = scmp.eq.s32.totalorder %s11, 0
    %p118 = por %p116, %p117
    %p119 = scmp.ne.s32.totalorder %s111, %s113
    %p120 = scmp.eq.s32.totalorder %s16, 1
    %p121 = por %p119, %p120
    %p122 = scmp.ne.s32.totalorder %s113, %s114
    %p123 = scmp.eq.s32.totalorder %s16, 0
    %p124 = por %p122, %p123
    %p125 = scmp.ne.s32.totalorder %s113, %s114
    %p126 = scmp.eq.s32.totalorder %s17, 1
    %p127 = por %p125, %p126
    %p129 = scmp.ne.s32.totalorder %s114, %s128
    %p130 = scmp.eq.s32.totalorder %s17, 0
    %p131 = por %p129, %p130
    %s133 = sadd.s32 %s132, 1
    %p136 = scmp.eq.s32.totalorder %s11, 1
    %p137 = scmp.ne.s32.totalorder %s132, %s134
    %p138 = scmp.eq.s32.totalorder %s11, 0
    %p139 = por %p137, %p138
    %p140 = scmp.ne.s32.totalorder %s132, %s134
    %p141 = scmp.eq.s32.totalorder %s16, 1
    %p142 = por %p140, %p141
    %p143 = scmp.ne.s32.totalorder %s134, %s135
    %p144 = scmp.eq.s32.totalorder %s16, 0
    %p145 = por %p143, %p144
    %p146 = scmp.ne.s32.totalorder %s134, %s135
    %p147 = scmp.eq.s32.totalorder %s17, 1
    %p148 = por %p146, %p147
    %p150 = scmp.ne.s32.totalorder %s135, %s149
    %p151 = scmp.eq.s32.totalorder %s17, 0
    %p152 = por %p150, %p151
    %s153 = ssub.s32 %s18, %s30
    %s154 = ssub.s32 %s19, %s26
    %s155 = sor.u32 %s153, %s154
    %p156 = scmp.eq.s32.totalorder %s155, 0
    %s158 = sadd.s32 %s157, 1
    %s159 = scalar_select %p156, %s157, %s158
    %p162 = pneg %p156
    %p163 = scmp.eq.s32.totalorder %s11, 1
    %p164 = por %p162, %p163
    %p165 = scmp.ne.s32.totalorder %s157, %s160
    %p166 = scmp.eq.s32.totalorder %s11, 0
    %p167 = por %p165, %p166
    %p168 = scmp.ne.s32.totalorder %s157, %s160
    %p169 = scmp.eq.s32.totalorder %s16, 1
    %p170 = por %p168, %p169
    %p171 = scmp.ne.s32.totalorder %s160, %s161
    %p172 = scmp.eq.s32.totalorder %s16, 0
    %p173 = por %p171, %p172
    %p174 = scmp.ne.s32.totalorder %s160, %s161
    %p175 = scmp.eq.s32.totalorder %s17, 1
    %p176 = por %p174, %p175
    %p178 = scmp.ne.s32.totalorder %s161, %s177
    %p179 = scmp.eq.s32.totalorder %s17, 0
    %p180 = por %p178, %p179
    %p181 = scmp.le.s32.totalorder 1, %s11
    %p182 = scmp.lt.s32.totalorder %s11, 3
    %p183 = pnand %p181, %p182
    %p184 = pneg %p183
    // Predicated region
    $region9: #{adf_forward.6} parent=5 // pred_check
      _
    $region10: #{adf_forward.6} parent=5 // pred_check_branch
      %186 = sbr.rel (%p183) target = $region12
    $region11: #{adf_forward.6} parent=5 // pred_region
      %s187 = ssub.s32 %s11, 1
      // Predicated region
      $region13: #{adf_forward.6} parent=11 // pred_check
        %p188 = pneg %p124
      $region14: #{adf_forward.6} parent=11 // pred_check_branch
        %190 = sbr.rel (%p188) target = $region16
      $region15: #{adf_forward.6} parent=11 // pred_region
        _
      $region16: #{adf_forward.6} parent=11 // pred_fallthru
        _
      // Predicated region
      $region17: #{adf_forward.6} parent=11 // pred_check
        %p191 = pneg %p145
      $region18: #{adf_forward.6} parent=11 // pred_check_branch
        %193 = sbr.rel (%p191) target = $region20
      $region19: #{adf_forward.6} parent=11 // pred_region
        _
      $region20: #{adf_forward.6} parent=11 // pred_fallthru
        _
    $region12: #{adf_forward.6} parent=5 // pred_fallthru
      _
    %p194 = scmp.lt.s32.totalorder %s11, 2
    // Predicated region
    $region21: #{adf_forward.6} parent=5 // pred_check
      %p195 = pneg %p194
    $region22: #{adf_forward.6} parent=5 // pred_check_branch
      %197 = sbr.rel (%p195) target = $region24
    $region23: #{adf_forward.6} parent=5 // pred_region
      // Predicated region
      $region25: #{adf_forward.6} parent=23 // pred_check
        %p198 = pneg %p45
      $region26: #{adf_forward.6} parent=23 // pred_check_branch
        %200 = sbr.rel (%p198) target = $region28
      $region27: #{adf_forward.6} parent=23 // pred_region
        %s201 = smul.u32 2, %s19
        %p202 = scmp.lt.s32.totalorder %s18, 1
        %s203 = scalar_select %p202, %s18, 1
        %p204 = scmp.lt.s32.totalorder %s201, 1
        %s205 = scalar_select %p204, %s201, 1
        %s206 = smul.addr %s203, 2
        %s207 = sadd.s32 %s205, %s206
        %s208 = smul.addr %s207, 4
        %s209 = scalar_lea.vmem %s0, %s208
        %s210 = smul.u32 2, %s19
      $region28: #{adf_forward.6} parent=23 // pred_fallthru
        _
      // Predicated region
      $region29: #{adf_forward.6} parent=23 // pred_check
        %p211 = pneg %p71
      $region30: #{adf_forward.6} parent=23 // pred_check_branch
        %213 = sbr.rel (%p211) target = $region32
      $region31: #{adf_forward.6} parent=23 // pred_region
        %p214 = scmp.lt.s32.totalorder %s18, 1
        %s215 = scalar_select %p214, %s18, 1
        %s216 = scalar_lea.vmem %s1, %s215
      $region32: #{adf_forward.6} parent=23 // pred_fallthru
        _
      // Predicated region
      $region33: #{adf_forward.6} parent=23 // pred_check
        %p217 = pneg %p97
      $region34: #{adf_forward.6} parent=23 // pred_check_branch
        %219 = sbr.rel (%p217) target = $region36
      $region35: #{adf_forward.6} parent=23 // pred_region
        %p220 = scmp.lt.s32.totalorder %s18, 1
        %s221 = scalar_select %p220, %s18, 1
        %s222 = scalar_lea.vmem %s2, %s221
      $region36: #{adf_forward.6} parent=23 // pred_fallthru
        _
    $region24: #{adf_forward.6} parent=5 // pred_fallthru
      _
    %p223 = scmp.le.s32.totalorder 1, %s11
    %p224 = scmp.lt.s32.totalorder %s11, 3
    %p225 = pnand %p223, %p224
    %p226 = pneg %p225
    // Predicated region
    $region37: #{adf_forward.6} parent=5 // pred_check
      _
    $region38: #{adf_forward.6} parent=5 // pred_check_branch
      %228 = sbr.rel (%p225) target = $region40
    $region39: #{adf_forward.6} parent=5 // pred_region
      %s229 = ssub.s32 %s11, 1
      %s230 = smul.u32 2, %s21
      %p231 = scmp.lt.s32.totalorder %s20, 1
      %s232 = scalar_select %p231, %s20, 1
      %p233 = scmp.lt.s32.totalorder %s230, 1
      %s234 = scalar_select %p233, %s230, 1
      %s235 = smul.addr %s232, 2
      %s236 = sadd.s32 %s234, %s235
      %s237 = smul.addr %s236, 4
      %s238 = scalar_lea.vmem %s0, %s237
      %p239 = pneg %p51
      %p240 = pneg %p48
      %p241 = scmp.lt.s32.totalorder %s20, 1
      %s242 = scalar_select %p241, %s20, 1
      %s243 = scalar_lea.vmem %s1, %s242
      %p244 = pneg %p77
      %p245 = pneg %p74
      %p246 = scmp.lt.s32.totalorder %s20, 1
      %s247 = scalar_select %p246, %s20, 1
      %s248 = scalar_lea.vmem %s2, %s247
      %p249 = pneg %p103
      %p250 = pneg %p100
      %p251 = pneg %p124
      %p252 = pneg %p121
      %p253 = pneg %p145
      %p254 = pneg %p142
      %p255 = pneg %p173
      %p256 = pneg %p170
      %p257 = scmp.lt.s32.totalorder %s20, 1
      %s258 = scalar_select %p257, %s20, 1
      %p259 = scmp.lt.s32.totalorder %s21, 0
      %s260 = scalar_select %p259, %s21, 0
      %s261 = sadd.s32 %s260, %s258
      %s262 = smul.addr %s261, 2
      %s263 = scalar_lea.vmem %s5, %s262
      %s264 = smul.u32 2, %s21
      %p265 = scmp.lt.s32.totalorder %s20, 1
      %s266 = scalar_select %p265, %s20, 1
      %p267 = scmp.lt.s32.totalorder %s264, 1
      %s268 = scalar_select %p267, %s264, 1
      %s269 = smul.addr %s266, 2
      %s270 = sadd.s32 %s268, %s269
      %s271 = smul.addr %s270, 4
      %s272 = scalar_lea.vmem %s0, %s271
      %s273 = smul.u32 2, %s21
      %p274 = scmp.lt.s32.totalorder %s20, 1
      %s275 = scalar_select %p274, %s20, 1
      %s276 = scalar_lea.vmem %s1, %s275
      %p277 = scmp.lt.s32.totalorder %s20, 1
      %s278 = scalar_select %p277, %s20, 1
      %s279 = scalar_lea.vmem %s2, %s278
      %p280 = scmp.lt.s32.totalorder %s20, 1
      %s281 = scalar_select %p280, %s20, 1
      %p282 = scmp.lt.s32.totalorder %s21, 0
      %s283 = scalar_select %p282, %s21, 0
      %s284 = sadd.s32 %s283, %s281
      %s285 = smul.addr %s284, 2
      %s286 = scalar_lea.vmem %s5, %s285
      %v288 = vld [vmem:[%s272] sm:$0xf]
      %v289 = vld [vmem:[%s272 + $0x4] sm:$0xf]
      %v290 = vld [vmem:[%s276] sm:$0x1]
      %v291 = vld [vmem:[%s279] sm:$0x1]
      %v294 = vunpack.c.l.b16 %v288
      %v295 = vunpack.c.l.b16 %v289
      %v296 = vpack.c.b16 %v295, %v294
      %vm297 = vcmask 15360
      %v299 = vsel %vm297, %v296, 0
      %vm301 = vcmask 1040384
      %v303 = vsel %vm301, %v290, 0
      %305 = vmatpush.bf16.msra.mxu0 0
      %306 = vmatpush.bf16.msra.mxu0 0
      %307 = vmatpush.bf16.msra.mxu0 0
      %308 = vmatpush.bf16.msra.mxu0 0
      %309 = vmatpush.bf16.msra.mxu0 0
      %310 = vmatpush.bf16.msra.mxu0 0
      %311 = vmatpush.bf16.msra.mxu0 0
      %312 = vmatpush.bf16.msra.mxu0 %v303
      %313 = vmatmul.bf16.gmra.mxu0 %v299
      %v314 = vpop.f32.mrf.mxu0
      %v315 = vadd.f32 0.0, %v314
      %v316 = vpop.f32.mrf.mxu0
      %v317 = vadd.f32 0.0, %v316
      %318 = vdwg.mxu0
      %vm319 = vcmask 31744
      %v320 = vsel %vm319, %v315, -inf
      %321 = vmax.xlane.f32.xlu0 %v320
      %v322 = vpop.xlane.xlu0 %321
      %v323 = vsel %vm319, %v317, -inf
      %324 = vmax.xlane.f32.xlu0 %v323
      %v325 = vpop.xlane.xlu0 %324
      %v326 = vsub.f32 %v315, %v322
      %v327 = vsub.f32 %v317, %v325
      %v328 = vmul.f32 %v326, 1.442695
      %v329 = vpow.pop %v328
      %v330 = vmul.f32 %v327, 1.442695
      %v331 = vpow.pop %v330
      %v332 = vsel %vm319, %v329, 0.0
      %333 = vadd.xlane.f32.xlu0 %v332
      %v334 = vpop.xlane.xlu0 %333
      %v335 = vsel %vm319, %v331, 0.0
      %336 = vadd.xlane.f32.xlu0 %v335
      %v337 = vpop.xlane.xlu0 %336
      %v338 = vrcp.pop %v334
      %v339 = vrcp.pop %v337
      %v340 = vmul.f32 %v329, %v338
      %v341 = vmul.f32 %v331, %v339
      %v342 = vpack.c.bf16 %v341, %v340
      %v344 = vsel %vm319, %v291, 0
      %v347 = vsel %vm319, %v342, 0
      %349 = vmatpush.bf16.xpose.msra.mxu0 0
      %350 = vmatpush.bf16.xpose.msra.mxu0 0
      %351 = vmatpush.bf16.xpose.msra.mxu0 0
      %352 = vmatpush.bf16.xpose.msra.mxu0 0
      %353 = vmatpush.bf16.xpose.msra.mxu0 0
      %354 = vmatpush.bf16.xpose.msra.mxu0 0
      %355 = vmatpush.bf16.xpose.msra.mxu0 0
      %356 = vmatpush.bf16.xpose.msra.mxu0 %v347
      %357 = vmatmul.bf16.gmra.mxu0 %v344
      %v358 = vpop.f32.mrf.mxu0
      %v359 = vadd.f32 0.0, %v358
      %v360 = vpop.f32.mrf.mxu0
      %361 = vdwg.mxu0
      %v362 = vld [vmem:[%s3] sm:$0x3]
      %v363 = vpack.c.bf16 %v359, %v359
      %v364 = vld [vmem:[%s4] sm:$0xf]
      %366 = vset.pattern.permute.xlu0 0
      %367 = vperm.xlu0 %366, %v364
      %v368 = vpop.permute.xlu0 %367
      %v371 = vsel %vm297, %v362, 0
      %v374 = vsel %vm301, %v363, 0
      %376 = vmatpush.bf16.msra.mxu0 0
      %377 = vmatpush.bf16.msra.mxu0 0
      %378 = vmatpush.bf16.msra.mxu0 0
      %379 = vmatpush.bf16.msra.mxu0 0
      %380 = vmatpush.bf16.msra.mxu0 0
      %381 = vmatpush.bf16.msra.mxu0 0
      %382 = vmatpush.bf16.msra.mxu0 0
      %383 = vmatpush.bf16.msra.mxu0 %v374
      %384 = vmatmul.bf16.gmra.mxu0 %v371
      %v385 = vpop.f32.mrf.mxu0
      %v386 = vadd.f32 %v368, %v385
      %v387 = vpop.f32.mrf.mxu0
      %388 = vdwg.mxu0
      %v389 = vpack.c.bf16 %v386, %v386
      %vm390 = vcmask 123904
      %391 = vst.msk [vmem:[%s286] sm:$0x3] %vm390, %v389
      %p392 = scmp.lt.s32.totalorder %s20, 1
      %s393 = scalar_select %p392, %s20, 1
      %p394 = scmp.lt.s32.totalorder %s21, 0
      %s395 = scalar_select %p394, %s21, 0
      %s396 = sadd.s32 %s395, %s393
      %s397 = smul.addr %s396, 2
      %s398 = scalar_lea.vmem %s5, %s397
      // Predicated region
      $region41: #{adf_forward.6} parent=39 // pred_check
        %p399 = pneg %p170
      $region42: #{adf_forward.6} parent=39 // pred_check_branch
        %401 = sbr.rel (%p399) target = $region44
      $region43: #{adf_forward.6} parent=39 // pred_region
        _
      $region44: #{adf_forward.6} parent=39 // pred_fallthru
        _
    $region40: #{adf_forward.6} parent=5 // pred_fallthru
      _
    %p402 = scmp.le.s32.totalorder 2, %s11
    // Predicated region
    $region45: #{adf_forward.6} parent=5 // pred_check
      %p403 = pneg %p402
    $region46: #{adf_forward.6} parent=5 // pred_check_branch
      %405 = sbr.rel (%p403) target = $region48
    $region47: #{adf_forward.6} parent=5 // pred_region
      %s406 = ssub.s32 %s11, 2
      // Predicated region
      $region49: #{adf_forward.6} parent=47 // pred_check
        %p407 = pneg %p176
      $region50: #{adf_forward.6} parent=47 // pred_check_branch
        %409 = sbr.rel (%p407) target = $region52
      $region51: #{adf_forward.6} parent=47 // pred_region
        %p410 = scmp.lt.s32.totalorder %s22, 1
        %s411 = scalar_select %p410, %s22, 1
        %p412 = scmp.lt.s32.totalorder %s23, 0
        %s413 = scalar_select %p412, %s23, 0
        %s414 = sadd.s32 %s413, %s411
        %s415 = smul.addr %s414, 2
        %s416 = scalar_lea.vmem %s5, %s415
      $region52: #{adf_forward.6} parent=47 // pred_fallthru
        _
    $region48: #{adf_forward.6} parent=5 // pred_fallthru
      _
  $region6: #{adf_forward.6} parent=0 // loop_footer
    %s15 = sadd.s32 1, %s11
  $region7: #{adf_forward.6} parent=0 // loop_footer_branch
    %10 = sbr.rel target = $region3
  $region8: #{adf_forward.6} parent=0 // loop_exit
    _

// kernel: adf_forward.7
$region0: #{adf_forward.7}
  #allocation0 [shape = 'u32[]', space=smem, size = 0x4, offset = 0x4, fixed_abs, tag = 'smem constant byte address 0x4 - core index']
  #allocation1 [shape = 'u32[72,128]{1,0:T(1,128)}', space=vmem, size = 0x9000, scoped, tag = 'internal scratch']
  %s0 = inlined_call_operand.vmem [shape: bf16[8,4,4], index: 0, kind: input, shape index: {}]
  %s1 = inlined_call_operand.vmem [shape: bf16[4,16], index: 1, kind: input, shape index: {}]
  %s2 = inlined_call_operand.vmem [shape: bf16[16,4], index: 2, kind: input, shape index: {}]
  %s3 = inlined_call_operand.vmem [shape: f32[8,16,16], index: 3, kind: input, shape index: {}]
  %s4 = inlined_call_operand.hbm [shape: f32[8,16,16], index: 4, kind: output, shape index: {}]
  %s5 = sld [smem:[#allocation0]]
  $region49: #{adf_forward.7} parent=0
    _
  %s7 = ssub.s32 1, %s5
  %s8 = scalar_select 0, %s7, %s5
  $region1: #{adf_forward.7} parent=0
    #allocation2 [shape = 'u8[16384]{0}', space=vmem, size = 0x4000, scoped, tag = 'output window, operand 0']
    #allocation3 [shape = 's32[2]{0}', space=sflag, size = 0x8, scoped, tag = 'scoped memory for adf_forward.7']
    %9 = vsyncpa [#allocation3], 0
    %s10 = scalar_lea.sflag [#allocation3], 1
    %11 = vsyncpa %s10, 0
    loop: start=0, step=1, limit=10
    $region2: #{adf_forward.7} parent=1 // loop_pre_header
      _
    $region3: #{adf_forward.7} parent=1 // loop_header
      %s13 = sphi 0, %s17
      %p14 = scmp.ge.s32.totalorder %s13, 10
      %s23 = sphi 0, %s25
      %s26 = sphi 0, %s23
      %s27 = sphi 0, %s26
      %s43 = sphi 0, %s27
      %s47 = sphi 0, %s47
      %s49 = sphi 0, %s47
      %s50 = sphi 0, %s49
      %s64 = sphi 0, %s50
      %s68 = sphi 0, %s68
      %s70 = sphi 0, %s68
      %s71 = sphi 0, %s70
      %s85 = sphi 0, %s71
      %s91 = sphi 0, %s93
      %s94 = sphi 0, %s91
      %s95 = sphi 0, %s94
      %s111 = sphi 0, %s95
      %s117 = sphi 0, %s119
      %s120 = sphi 0, %s117
      %s121 = sphi 0, %s120
      %s137 = sphi 0, %s121
    $region4: #{adf_forward.7} parent=1 // loop_header_branch
      %16 = sbr.rel (%p14) target = $region8
    $region5: #{adf_forward.7} parent=1 // loop_body
      %s18 = ssub.s32 %s13, 1
      %s19 = ssub.s32 %s13, 2
      %s20 = sadd.s32 %s13, 1
      %s21 = ssub.s32 %s13, %s20
      %p22 = scmp.eq.s32.totalorder %s21, 0
      %s24 = sadd.s32 %s23, 1
      %s25 = scalar_select %p22, %s23, %s24
      %p28 = pneg %p22
      %p29 = scmp.eq.s32.totalorder %s13, 7
      %p30 = por %p28, %p29
      %p31 = scmp.ne.s32.totalorder %s23, %s26
      %p32 = scmp.eq.s32.totalorder %s13, 0
      %p33 = por %p31, %p32
      %p34 = scmp.ne.s32.totalorder %s23, %s26
      %p35 = scmp.eq.s32.totalorder %s18, 7
      %p36 = por %p34, %p35
      %p37 = scmp.ne.s32.totalorder %s26, %s27
      %p38 = scmp.eq.s32.totalorder %s18, 0
      %p39 = por %p37, %p38
      %p40 = scmp.ne.s32.totalorder %s26, %s27
      %p41 = scmp.eq.s32.totalorder %s19, 7
      %p42 = por %p40, %p41
      %p44 = scmp.ne.s32.totalorder %s27, %s43
      %p45 = scmp.eq.s32.totalorder %s19, 0
      %p46 = por %p44, %p45
      %s48 = sadd.s32 %s47, 1
      %p51 = scmp.eq.s32.totalorder %s13, 7
      %p52 = scmp.ne.s32.totalorder %s47, %s49
      %p53 = scmp.eq.s32.totalorder %s13, 0
      %p54 = por %p52, %p53
      %p55 = scmp.ne.s32.totalorder %s47, %s49
      %p56 = scmp.eq.s32.totalorder %s18, 7
      %p57 = por %p55, %p56
      %p58 = scmp.ne.s32.totalorder %s49, %s50
      %p59 = scmp.eq.s32.totalorder %s18, 0
      %p60 = por %p58, %p59
      %p61 = scmp.ne.s32.totalorder %s49, %s50
      %p62 = scmp.eq.s32.totalorder %s19, 7
      %p63 = por %p61, %p62
      %p65 = scmp.ne.s32.totalorder %s50, %s64
      %p66 = scmp.eq.s32.totalorder %s19, 0
      %p67 = por %p65, %p66
      %s69 = sadd.s32 %s68, 1
      %p72 = scmp.eq.s32.totalorder %s13, 7
      %p73 = scmp.ne.s32.totalorder %s68, %s70
      %p74 = scmp.eq.s32.totalorder %s13, 0
      %p75 = por %p73, %p74
      %p76 = scmp.ne.s32.totalorder %s68, %s70
      %p77 = scmp.eq.s32.totalorder %s18, 7
      %p78 = por %p76, %p77
      %p79 = scmp.ne.s32.totalorder %s70, %s71
      %p80 = scmp.eq.s32.totalorder %s18, 0
      %p81 = por %p79, %p80
      %p82 = scmp.ne.s32.totalorder %s70, %s71
      %p83 = scmp.eq.s32.totalorder %s19, 7
      %p84 = por %p82, %p83
      %p86 = scmp.ne.s32.totalorder %s71, %s85
      %p87 = scmp.eq.s32.totalorder %s19, 0
      %p88 = por %p86, %p87
      %s89 = ssub.s32 %s13, %s20
      %p90 = scmp.eq.s32.totalorder %s89, 0
      %s92 = sadd.s32 %s91, 1
      %s93 = scalar_select %p90, %s91, %s92
      %p96 = pneg %p90
      %p97 = scmp.eq.s32.totalorder %s13, 7
      %p98 = por %p96, %p97
      %p99 = scmp.ne.s32.totalorder %s91, %s94
      %p100 = scmp.eq.s32.totalorder %s13, 0
      %p101 = por %p99, %p100
      %p102 = scmp.ne.s32.totalorder %s91, %s94
      %p103 = scmp.eq.s32.totalorder %s18, 7
      %p104 = por %p102, %p103
      %p105 = scmp.ne.s32.totalorder %s94, %s95
      %p106 = scmp.eq.s32.totalorder %s18, 0
      %p107 = por %p105, %p106
      %p108 = scmp.ne.s32.totalorder %s94, %s95
      %p109 = scmp.eq.s32.totalorder %s19, 7
      %p110 = por %p108, %p109
      %p112 = scmp.ne.s32.totalorder %s95, %s111
      %p113 = scmp.eq.s32.totalorder %s19, 0
      %p114 = por %p112, %p113
      %s115 = ssub.s32 %s13, %s20
      %p116 = scmp.eq.s32.totalorder %s115, 0
      %s118 = sadd.s32 %s117, 1
      %s119 = scalar_select %p116, %s117, %s118
      %p122 = pneg %p116
      %p123 = scmp.eq.s32.totalorder %s13, 7
      %p124 = por %p122, %p123
      %p125 = scmp.ne.s32.totalorder %s117, %s120
      %p126 = scmp.eq.s32.totalorder %s13, 0
      %p127 = por %p125, %p126
      %p128 = scmp.ne.s32.totalorder %s117, %s120
      %p129 = scmp.eq.s32.totalorder %s18, 7
      %p130 = por %p128, %p129
      %p131 = scmp.ne.s32.totalorder %s120, %s121
      %p132 = scmp.eq.s32.totalorder %s18, 0
      %p133 = por %p131, %p132
      %p134 = scmp.ne.s32.totalorder %s120, %s121
      %p135 = scmp.eq.s32.totalorder %s19, 7
      %p136 = por %p134, %p135
      %p138 = scmp.ne.s32.totalorder %s121, %s137
      %p139 = scmp.eq.s32.totalorder %s19, 0
      %p140 = por %p138, %p139
      %p141 = scmp.le.s32.totalorder 1, %s13
      %p142 = scmp.lt.s32.totalorder %s13, 9
      %p143 = pnand %p141, %p142
      %p144 = pneg %p143
      // Predicated region
      $region9: #{adf_forward.7} parent=5 // pred_check
        _
      $region10: #{adf_forward.7} parent=5 // pred_check_branch
        %146 = sbr.rel (%p143) target = $region12
      $region11: #{adf_forward.7} parent=5 // pred_region
        %s147 = ssub.s32 %s13, 1
        // Predicated region
        $region13: #{adf_forward.7} parent=11 // pred_check
          %p148 = pneg %p60
        $region14: #{adf_forward.7} parent=11 // pred_check_branch
          %150 = sbr.rel (%p148) target = $region16
        $region15: #{adf_forward.7} parent=11 // pred_region
          _
        $region16: #{adf_forward.7} parent=11 // pred_fallthru
          _
        // Predicated region
        $region17: #{adf_forward.7} parent=11 // pred_check
          %p151 = pneg %p81
        $region18: #{adf_forward.7} parent=11 // pred_check_branch
          %153 = sbr.rel (%p151) target = $region20
        $region19: #{adf_forward.7} parent=11 // pred_region
          _
        $region20: #{adf_forward.7} parent=11 // pred_fallthru
          _
      $region12: #{adf_forward.7} parent=5 // pred_fallthru
        _
      %p154 = scmp.lt.s32.totalorder %s13, 8
      // Predicated region
      $region21: #{adf_forward.7} parent=5 // pred_check
        %p155 = pneg %p154
      $region22: #{adf_forward.7} parent=5 // pred_check_branch
        %157 = sbr.rel (%p155) target = $region24
      $region23: #{adf_forward.7} parent=5 // pred_region
        // Predicated region
        $region25: #{adf_forward.7} parent=23 // pred_check
          %p158 = pneg %p33
        $region26: #{adf_forward.7} parent=23 // pred_check_branch
          %160 = sbr.rel (%p158) target = $region28
        $region27: #{adf_forward.7} parent=23 // pred_region
          %p161 = scmp.lt.s32.totalorder %s13, 7
          %s162 = scalar_select %p161, %s13, 7
          %s163 = smul.addr %s162, 2
          %s164 = scalar_lea.vmem %s0, %s163
        $region28: #{adf_forward.7} parent=23 // pred_fallthru
          _
        // Predicated region
        $region29: #{adf_forward.7} parent=23 // pred_check
          %p165 = pneg %p101
        $region30: #{adf_forward.7} parent=23 // pred_check_branch
          %167 = sbr.rel (%p165) target = $region32
        $region31: #{adf_forward.7} parent=23 // pred_region
          %p168 = scmp.lt.s32.totalorder %s13, 7
          %s169 = scalar_select %p168, %s13, 7
          %s170 = smul.addr %s169, 2
          %s171 = smul.addr %s170, 8
          %s172 = scalar_lea.vmem %s3, %s171
        $region32: #{adf_forward.7} parent=23 // pred_fallthru
          _
      $region24: #{adf_forward.7} parent=5 // pred_fallthru
        _
      %p173 = scmp.le.s32.totalorder 1, %s13
      %p174 = scmp.lt.s32.totalorder %s13, 9
      %p175 = pnand %p173, %p174
      %p176 = pneg %p175
      // Predicated region
      $region33: #{adf_forward.7} parent=5 // pred_check
        _
      $region34: #{adf_forward.7} parent=5 // pred_check_branch
        %178 = sbr.rel (%p175) target = $region36
      $region35: #{adf_forward.7} parent=5 // pred_region
        %s179 = ssub.s32 %s13, 1
        %p180 = scmp.lt.s32.totalorder %s18, 7
        %s181 = scalar_select %p180, %s18, 7
        %s182 = smul.addr %s181, 2
        %s183 = scalar_lea.vmem %s0, %s182
        %p184 = pneg %p39
        %p185 = pneg %p36
        %p186 = pneg %p60
        %p187 = pneg %p57
        %p188 = pneg %p81
        %p189 = pneg %p78
        %p190 = scmp.lt.s32.totalorder %s18, 7
        %s191 = scalar_select %p190, %s18, 7
        %s192 = smul.addr %s191, 2
        %s193 = smul.addr %s192, 8
        %s194 = scalar_lea.vmem %s3, %s193
        %p195 = pneg %p107
        %p196 = pneg %p104
        %p197 = pneg %p133
        %p198 = pneg %p130
        %s199 = sand.u32 %s120, 1
        %s200 = scalar_lea.sflag [#allocation3], %s199
        %s201 = sand.u32 %s120, 1
        %s202 = smul.addr %s201, 16
        %s203 = scalar_lea.vmem [#allocation2], %s202
        %p204 = scmp.lt.s32.totalorder %s18, 7
        %s205 = scalar_select %p204, %s18, 7
        %s206 = smul.addr %s205, 2
        %s207 = scalar_lea.vmem %s0, %s206
        %p208 = scmp.lt.s32.totalorder %s18, 7
        %s209 = scalar_select %p208, %s18, 7
        %s210 = smul.addr %s209, 2
        %s211 = smul.addr %s210, 8
        %s212 = scalar_lea.vmem %s3, %s211
        %v214 = vld [vmem:[%s207] sm:$0x3]
        %v215 = vld [vmem:[%s1] sm:$0x3]
        %vm216 = vcmask 31744
        %v218 = vsel %vm216, %v214, 0
        %vm220 = vcmask 1041408
        %v222 = vsel %vm220, %v215, 0
        %224 = vmatpush.bf16.msra.mxu0 0
        %225 = vmatpush.bf16.msra.mxu0 0
        %226 = vmatpush.bf16.msra.mxu0 0
        %227 = vmatpush.bf16.msra.mxu0 0
        %228 = vmatpush.bf16.msra.mxu0 0
        %229 = vmatpush.bf16.msra.mxu0 0
        %230 = vmatpush.bf16.msra.mxu0 0
        %231 = vmatpush.bf16.msra.mxu0 %v222
        %232 = vmatmul.bf16.gmra.mxu0 %v218
        %v233 = vpop.f32.mrf.mxu0
        %v234 = vadd.f32 0.0, %v233
        %v235 = vpop.f32.mrf.mxu0
        %236 = vdwg.mxu0
        %v237 = vld [vmem:[%s2] sm:$0xf]
        %v238 = vld [vmem:[%s2 + $0x4] sm:$0xf]
        %v239 = vpack.c.bf16 %v234, %v234
        %v240 = vld [vmem:[%s212] sm:$0xff]
        %v241 = vld [vmem:[%s212 + $0x8] sm:$0xff]
        %v244 = vunpack.c.l.b16 %v237
        %v245 = vunpack.c.l.b16 %v238
        %v246 = vpack.c.b16 %v245, %v244
        %v248 = vsel %vm216, %v246, 0
        %v251 = vsel %vm220, %v239, 0
        %253 = vmatpush.bf16.msra.mxu0 0
        %254 = vmatpush.bf16.msra.mxu0 0
        %255 = vmatpush.bf16.msra.mxu0 0
        %256 = vmatpush.bf16.msra.mxu0 0
        %257 = vmatpush.bf16.msra.mxu0 0
        %258 = vmatpush.bf16.msra.mxu0 0
        %259 = vmatpush.bf16.msra.mxu0 0
        %260 = vmatpush.bf16.msra.mxu0 %v251
        %261 = vmatmul.bf16.gmra.mxu0 %v248
        %v262 = vpop.f32.mrf.mxu0
        %v263 = vadd.f32 %v240, %v262
        %v264 = vpop.f32.mrf.mxu0
        %v265 = vadd.f32 %v241, %v264
        %266 = vdwg.mxu0
        %vm267 = vcmask 130048
        %268 = vst.msk [vmem:[%s203] sm:$0xff] %vm267, %v263
        %269 = vst.msk [vmem:[%s203 + $0x8] sm:$0xff] %vm267, %v265
        %s270 = sand.u32 %s120, 1
        %s271 = scalar_lea.sflag [#allocation3], %s270
        %s272 = sand.u32 %s120, 1
        %s273 = smul.addr %s272, 16
        %s274 = scalar_lea.vmem [#allocation2], %s273
        // Predicated region
        $region37: #{adf_forward.7} parent=35 // pred_check
          %p275 = pneg %p130
        $region38: #{adf_forward.7} parent=35 // pred_check_branch
          %277 = sbr.rel (%p275) target = $region40
        $region39: #{adf_forward.7} parent=35 // pred_region
          %279 = vsyncadd %s271, 0
          %s280 = smul.addr %s18, 2
          %s281 = smul.addr %s280, 8
          %s282 = scalar_lea.hbm %s4, %s281
          %s283 = sshll.u32 %s274, 4
          %s284 = int_to_ptr.vmem [resolvable:$true] %s283
          %s285 = sshll.u32 %s282, 4
          %s286 = int_to_ptr.hbm [resolvable:$true] %s285
          %291 = dma.vmem_to_hbm [thread:$0]  %s284, 256, %s286, %s271, 128, 128, 8
        $region40: #{adf_forward.7} parent=35 // pred_fallthru
          _
      $region36: #{adf_forward.7} parent=5 // pred_fallthru
        _
      %p292 = scmp.le.s32.totalorder 2, %s13
      // Predicated region
      $region41: #{adf_forward.7} parent=5 // pred_check
        %p293 = pneg %p292
      $region42: #{adf_forward.7} parent=5 // pred_check_branch
        %295 = sbr.rel (%p293) target = $region44
      $region43: #{adf_forward.7} parent=5 // pred_region
        %s296 = ssub.s32 %s13, 2
        // Predicated region
        $region45: #{adf_forward.7} parent=43 // pred_check
          %p297 = pneg %p136
        $region46: #{adf_forward.7} parent=43 // pred_check_branch
          %299 = sbr.rel (%p297) target = $region48
        $region47: #{adf_forward.7} parent=43 // pred_region
          %s300 = sand.u32 %s121, 1
          %s301 = scalar_lea.sflag [#allocation3], %s300
          %s302 = sand.u32 %s121, 1
          %s303 = smul.addr %s302, 16
          %s304 = scalar_lea.vmem [#allocation2], %s303
          %306 = dma.done %s301, 256
        $region48: #{adf_forward.7} parent=43 // pred_fallthru
          _
      $region44: #{adf_forward.7} parent=5 // pred_fallthru
        _
    $region6: #{adf_forward.7} parent=1 // loop_footer
      %s17 = sadd.s32 1, %s13
    $region7: #{adf_forward.7} parent=1 // loop_footer_branch
      %12 = sbr.rel target = $region3
    $region8: #{adf_forward.7} parent=1 // loop_exit
      _
    %307 = vsyncpa [#allocation3], 1
    %s308 = scalar_lea.sflag [#allocation3], 1
    %309 = vsyncpa %s308, 1

</llo_original>
